<compile_context>
chip_gen: v7x
topology: tpu7x:2x2x1
jax: 0.10.0
libtpu: 0.0.40
codegen_flags: <defaults>
</compile_context>

<pallas_src>
import functools
import math

import jax
import jax.numpy as jnp
from jax import lax
from jax.experimental import pallas as pl
from jax.experimental.pallas import tpu as pltpu

# bf16 operands for every MXU matmul; accumulation and all VPU work stay f32.
MATMUL_DTYPE = jnp.bfloat16

WEIGHT_ORDER = ("wqkv", "bqkv", "wo", "bo", "g1", "be1",
                "w1", "bf1", "w2", "bf2", "g2", "be2")


def _layer_norm(v, gamma, beta, eps=1e-5):
    mu = jnp.mean(v, axis=-1, keepdims=True)
    var = jnp.mean((v - mu) ** 2, axis=-1, keepdims=True)
    return (v - mu) * lax.rsqrt(var + eps) * gamma + beta


# ----------------------------------------------------------------------------
# Pallas kernel: one encoder layer for one batch tile (grid = batch_tiles x layers).
# ----------------------------------------------------------------------------
def bert_encoder_kernel(
    valid_lens_ref,                     # SMEM (B,) int32 (scalar prefetch)
    x_ref,                              # VMEM (Bt*S, H) f32  (layer-0 input)
    wqkv_ref, bqkv_ref,                 # (1,H,3H) bf16 / (1,1,3H) f32
    wo_ref, bo_ref,                     # (1,H,H)  bf16 / (1,1,H)  f32
    g1_ref, be1_ref,                    # LayerNorm 1 (1,1,H) f32
    w1_ref, bf1_ref,                    # FFN dense1 (1,H,F) bf16 / (1,1,F) f32
    w2_ref, bf2_ref,                    # FFN dense2 (1,F,H) bf16 / (1,1,H) f32
    g2_ref, be2_ref,                    # LayerNorm 2 (1,1,H) f32
    out_ref,                            # VMEM (Bt*S, H) f32 (resident across layers)
    *, num_heads, seq_len, batch_per_step,
):
    bi = pl.program_id(0)               # batch-tile index
    layer = pl.program_id(1)            # layer index (trailing "arbitrary" axis)

    R, H = out_ref.shape                # R = Bt * S rows
    S = seq_len
    Bt = batch_per_step
    nh = num_heads
    dh = H // nh
    G = Bt * nh                         # batched attention "heads" axis

    # Layer 0: seed the VMEM-resident activation block from the embeddings.
    @pl.when(layer == 0)
    def _():
        out_ref[...] = x_ref[...]

    x = out_ref[...]                    # (R, H) f32 running activation

    # --- fused QKV projection (1/sqrt(dh) already folded into Q at prep time) --
    qkv = jnp.dot(x.astype(MATMUL_DTYPE), wqkv_ref[0],
                  preferred_element_type=jnp.float32) + bqkv_ref[0]
    q = qkv[:, :H]
    k = qkv[:, H:2 * H]
    v = qkv[:, 2 * H:]

    # TODO(synk): replace the reshape+transpose head split/merge with
    # pltpu.einshape once its equation grammar is confirmed for 4-D operands.
    def split_heads(t):                 # (R, H) -> (G, S, dh)
        return jnp.transpose(t.reshape(Bt, S, nh, dh), (0, 2, 1, 3)).reshape(G, S, dh)

    qh = split_heads(q).astype(MATMUL_DTYPE)
    kh = split_heads(k).astype(MATMUL_DTYPE)
    vh = split_heads(v).astype(MATMUL_DTYPE)

    # Batched scores over all (batch, head) pairs: single-batch-dim dot_general.
    scores = jnp.einsum('gqd,gkd->gqk', qh, kh,
                        preferred_element_type=jnp.float32)        # (G, S, S)

    # key-position mask from valid_lens (d2l masked_softmax fill value -1e6)
    vl_scalars = []
    for i in range(Bt):                 # static unroll; Bt scalar SMEM reads
        vli = valid_lens_ref[bi * Bt + i]
        vl_scalars.extend([vli] * nh)
    vl = jnp.stack(vl_scalars).reshape(G, 1, 1)
    col = lax.broadcasted_iota(jnp.int32, (1, S, S), 2)
    scores = jnp.where(col < vl, scores, jnp.float32(-1e6))

    # numerically-stable softmax; divide -> EUP approximate reciprocal
    scores = scores - jnp.max(scores, axis=-1, keepdims=True)
    p = jnp.exp(scores)
    p = p * pl.reciprocal(jnp.sum(p, axis=-1, keepdims=True), approx=True)

    ctx = jnp.einsum('gqk,gkd->gqd', p.astype(MATMUL_DTYPE), vh,
                     preferred_element_type=jnp.float32)           # (G, S, dh)
    attn = jnp.transpose(ctx.reshape(Bt, nh, S, dh), (0, 2, 1, 3)).reshape(R, H)

    attn = jnp.dot(attn.astype(MATMUL_DTYPE), wo_ref[0],
                   preferred_element_type=jnp.float32) + bo_ref[0]

    # --- AddNorm 1 (dropout = identity in eval mode) ---------------------------
    y = _layer_norm(x + attn, g1_ref[0], be1_ref[0])

    # --- position-wise FFN -----------------------------------------------------
    h1 = jnp.dot(y.astype(MATMUL_DTYPE), w1_ref[0],
                 preferred_element_type=jnp.float32) + bf1_ref[0]
    h1 = jnp.maximum(h1, 0.0)
    ffn = jnp.dot(h1.astype(MATMUL_DTYPE), w2_ref[0],
                  preferred_element_type=jnp.float32) + bf2_ref[0]

    # --- AddNorm 2: becomes next layer's input (stays in VMEM) ----------------
    out_ref[...] = _layer_norm(y + ffn, g2_ref[0], be2_ref[0])


# ----------------------------------------------------------------------------
# Wrapper: run the whole encoder stack in one pallas_call.
# ----------------------------------------------------------------------------
def _pick_batch_tile(B, S):
    # Target ~128 MXU rows per grid step, but keep >= 2 grid steps so the
    # "parallel" batch axis can feed both TensorCores of a 2-TC (v7x) chip,
    # and require Bt | B.
    bt = max(1, min(B, 128 // max(S, 1)))
    while bt > 1 and (B % bt != 0 or B // bt < 2):
        bt -= 1
    return bt


def _vmem_limit_bytes():
    # Never request more than ~3/4 of the physical per-core VMEM:
    # v7x has only 64 MiB/TC while v5e/v6e have 128 MiB.
    try:
        cap = int(pltpu.get_tpu_info().vmem_capacity_bytes)
        return min((cap * 3) // 4, 96 * 1024 * 1024)
    except Exception:
        return 48 * 1024 * 1024


def bert_encoder_blocks(kparams, x, valid_lens, num_heads):
    """Run all encoder blocks over x=(B,S,H) in a single Pallas kernel."""
    B, S, H = x.shape
    L = kparams["wqkv"].shape[0]
    F = kparams["w1"].shape[-1]
    Bt = _pick_batch_tile(B, S)
    nbt = B // Bt
    R = Bt * S

    x2d = x.reshape(B * S, H)           # HBM-side reshape: free, row-major slab

    weights = [kparams[name] for name in WEIGHT_ORDER]

    x_spec = pl.BlockSpec((R, H), lambda bt, l, vl: (bt, 0))        # const over layers
    weight_specs = [
        pl.BlockSpec((1,) + w.shape[1:],
                     lambda bt, l, vl, n=w.ndim - 1: (l,) + (0,) * n)
        for w in weights
    ]
    out_spec = pl.BlockSpec((R, H), lambda bt, l, vl: (bt, 0))      # resident over layers

    grid_spec = pltpu.PrefetchScalarGridSpec(
        num_scalar_prefetch=1,
        grid=(nbt, L),
        in_specs=[x_spec] + weight_specs,
        out_specs=out_spec,
    )

    # Advisory cost estimate for the whole stack.
    flops = L * (2 * B * S * H * (3 * H + H)      # fused QKV + output projection
                 + 4 * B * S * S * H              # scores + context (all heads)
                 + 4 * B * S * H * F)             # FFN dense1 + dense2
    transcendentals = L * B * (num_heads * (S * S + S) + 2 * S)
    weight_bytes = sum(int(w.size) * w.dtype.itemsize for w in weights)
    bytes_accessed = nbt * weight_bytes + 2 * B * S * H * 4 + B * 4

    out2d = pl.pallas_call(
        functools.partial(bert_encoder_kernel, num_heads=num_heads,
                          seq_len=S, batch_per_step=Bt),
        grid_spec=grid_spec,
        out_shape=jax.ShapeDtypeStruct((B * S, H), jnp.float32),
        compiler_params=pltpu.CompilerParams(
            dimension_semantics=("parallel", "arbitrary"),
            vmem_limit_bytes=_vmem_limit_bytes(),
        ),
        cost_estimate=pl.CostEstimate(
            flops=int(flops),
            transcendentals=int(transcendentals),
            bytes_accessed=int(bytes_accessed),
        ),
    )(valid_lens, x2d, *weights)

    return out2d.reshape(B, S, H)


# ----------------------------------------------------------------------------
# Parameters: plain f32 init (matches the torch module) + one-time kernel prep.
# ----------------------------------------------------------------------------
def init_params(key, vocab_size, num_hiddens, ffn_num_hiddens, num_layers, max_len):
    H, F = num_hiddens, ffn_num_hiddens
    keys = jax.random.split(key, 3 + num_layers)
    params = {
        "token_embedding": jax.random.normal(keys[0], (vocab_size, H), jnp.float32) * 0.05,
        "segment_embedding": jax.random.normal(keys[1], (2, H), jnp.float32) * 0.05,
        "pos_embedding": jax.random.normal(keys[2], (1, max_len, H), jnp.float32) * 0.05,
        "layers": [],
    }
    for i in range(num_layers):
        lk = jax.random.split(keys[3 + i], 12)
        layer = {
            "wq": jax.random.normal(lk[0], (H, H), jnp.float32) * 0.05,
            "bq": jax.random.normal(lk[1], (H,), jnp.float32) * 0.02,
            "wk": jax.random.normal(lk[2], (H, H), jnp.float32) * 0.05,
            "bk": jax.random.normal(lk[3], (H,), jnp.float32) * 0.02,
            "wv": jax.random.normal(lk[4], (H, H), jnp.float32) * 0.05,
            "bv": jax.random.normal(lk[5], (H,), jnp.float32) * 0.02,
            "wo": jax.random.normal(lk[6], (H, H), jnp.float32) * 0.05,
            "bo": jax.random.normal(lk[7], (H,), jnp.float32) * 0.02,
            "g1": jnp.ones((H,), jnp.float32),
            "be1": jnp.zeros((H,), jnp.float32),
            "w1": jax.random.normal(lk[8], (H, F), jnp.float32) * 0.05,
            "bf1": jax.random.normal(lk[9], (F,), jnp.float32) * 0.02,
            "w2": jax.random.normal(lk[10], (F, H), jnp.float32) * 0.05,
            "bf2": jax.random.normal(lk[11], (H,), jnp.float32) * 0.02,
            "g2": jnp.ones((H,), jnp.float32),
            "be2": jnp.zeros((H,), jnp.float32),
        }
        params["layers"].append(layer)
    return params


def prepare_kernel_params(params, num_heads):
    """One-time weight transform for the kernel: fuse Q|K|V, fold 1/sqrt(dh)
    into the Q columns, cast matmul weights to bf16, stack along a layer axis."""
    layers = params["layers"]
    H = layers[0]["wq"].shape[0]
    dh = H // num_heads
    scale = 1.0 / math.sqrt(dh)

    def stack(fn):
        return jnp.stack([fn(p) for p in layers], axis=0)

    return {
        "wqkv": stack(lambda p: jnp.concatenate(
            [p["wq"] * scale, p["wk"], p["wv"]], axis=1).astype(MATMUL_DTYPE)),   # (L,H,3H)
        "bqkv": stack(lambda p: jnp.concatenate(
            [p["bq"] * scale, p["bk"], p["bv"]]).reshape(1, -1)),                 # (L,1,3H)
        "wo": stack(lambda p: p["wo"].astype(MATMUL_DTYPE)),                      # (L,H,H)
        "bo": stack(lambda p: p["bo"].reshape(1, -1)),                            # (L,1,H)
        "g1": stack(lambda p: p["g1"].reshape(1, -1)),
        "be1": stack(lambda p: p["be1"].reshape(1, -1)),
        "w1": stack(lambda p: p["w1"].astype(MATMUL_DTYPE)),                      # (L,H,F)
        "bf1": stack(lambda p: p["bf1"].reshape(1, -1)),                          # (L,1,F)
        "w2": stack(lambda p: p["w2"].astype(MATMUL_DTYPE)),                      # (L,F,H)
        "bf2": stack(lambda p: p["bf2"].reshape(1, -1)),
        "g2": stack(lambda p: p["g2"].reshape(1, -1)),
        "be2": stack(lambda p: p["be2"].reshape(1, -1)),
    }


def bert_encoder_forward(params, kparams, tokens, segments, valid_lens, num_heads):
    # TODO(synk): embedding gathers stay in plain JAX (data-dependent gather;
    # not worth a Pallas DMA-gather kernel at these sizes).
    S = tokens.shape[1]
    x = params["token_embedding"][tokens] + params["segment_embedding"][segments]
    x = x + params["pos_embedding"][:, :S, :]
    # Hot path: all encoder blocks in one Pallas kernel.
    return bert_encoder_blocks(kparams, x, valid_lens, num_heads)


# ----------------------------------------------------------------------------
# Pure-JAX f32 reference (sanity check of the kernel math).
# ----------------------------------------------------------------------------
def reference_forward(params, tokens, segments, valid_lens, num_heads):
    S = tokens.shape[1]
    x = params["token_embedding"][tokens] + params["segment_embedding"][segments]
    x = x + params["pos_embedding"][:, :S, :]
    B, _, H = x.shape
    dh = H // num_heads
    scale = 1.0 / math.sqrt(dh)
    col = lax.broadcasted_iota(jnp.int32, (S, S), 1)

    def layer_norm(v, g, b):
        mu = jnp.mean(v, axis=-1, keepdims=True)
        var = jnp.mean((v - mu) ** 2, axis=-1, keepdims=True)
        return (v - mu) * lax.rsqrt(var + 1e-5) * g + b

    for p in params["layers"]:
        outs = []
        for bi in range(B):
            xb = x[bi]
            q = xb @ p["wq"] + p["bq"]
            k = xb @ p["wk"] + p["bk"]
            v = xb @ p["wv"] + p["bv"]
            mask = col < valid_lens[bi]
            heads = []
            for h in range(num_heads):
                qh, kh, vh = (t[:, h * dh:(h + 1) * dh] for t in (q, k, v))
                s = qh @ kh.T * scale
                s = jnp.where(mask, s, -1e6)
                s = s - jnp.max(s, axis=-1, keepdims=True)
                pr = jnp.exp(s)
                pr = pr / jnp.sum(pr, axis=-1, keepdims=True)
                heads.append(pr @ vh)
            attn = jnp.concatenate(heads, axis=-1) @ p["wo"] + p["bo"]
            y = layer_norm(xb + attn, p["g1"], p["be1"])
            ffn = jnp.maximum(y @ p["w1"] + p["bf1"], 0.0) @ p["w2"] + p["bf2"]
            outs.append(layer_norm(y + ffn, p["g2"], p["be2"]))
        x = jnp.stack(outs, axis=0)
    return x


if __name__ == "__main__":
    # Small, module-consistent shapes.
    vocab_size = 50
    num_hiddens = 32          # key_size = query_size = value_size = num_hiddens
    ffn_num_hiddens = 64
    num_heads = 2
    num_layers = 2
    max_len = 64
    B, S = 2, 8

    key = jax.random.PRNGKey(0)
    pkey, tkey, skey = jax.random.split(key, 3)
    params = init_params(pkey, vocab_size, num_hiddens, ffn_num_hiddens,
                         num_layers, max_len)
    kparams = prepare_kernel_params(params, num_heads)   # one-time bf16/fused prep

    tokens = jax.random.randint(tkey, (B, S), 0, vocab_size, dtype=jnp.int32)
    segments = jax.random.randint(skey, (B, S), 0, 2, dtype=jnp.int32)
    valid_lens = jnp.array([5, 8], dtype=jnp.int32)

    out = bert_encoder_forward(params, kparams, tokens, segments, valid_lens, num_heads)
    out = jax.block_until_ready(out)

    ref = reference_forward(params, tokens, segments, valid_lens, num_heads)
    assert out.shape == (B, S, num_hiddens)
    # bf16 matmul operands + approx reciprocal vs. all-f32 reference -> loose tol.
    assert jnp.allclose(out, ref, atol=5e-2, rtol=5e-2), "kernel/reference mismatch"

    print("KERNEL_OK")
</pallas_src>

<mosaic_0001>
module attributes {stable_mosaic.version = 11 : i64} {
  func.func @bert_encoder_kernel(%arg0: i32, %arg1: i32, %arg2: memref<2xi32, #tpu.memory_space<smem>>, %arg3: memref<8x32xf32, #tpu.memory_space<vmem>>, %arg4: memref<1x32x96xbf16, #tpu.memory_space<vmem>>, %arg5: memref<1x1x96xf32, #tpu.memory_space<vmem>>, %arg6: memref<1x32x32xbf16, #tpu.memory_space<vmem>>, %arg7: memref<1x1x32xf32, #tpu.memory_space<vmem>>, %arg8: memref<1x1x32xf32, #tpu.memory_space<vmem>>, %arg9: memref<1x1x32xf32, #tpu.memory_space<vmem>>, %arg10: memref<1x32x64xbf16, #tpu.memory_space<vmem>>, %arg11: memref<1x1x64xf32, #tpu.memory_space<vmem>>, %arg12: memref<1x64x32xbf16, #tpu.memory_space<vmem>>, %arg13: memref<1x1x32xf32, #tpu.memory_space<vmem>>, %arg14: memref<1x1x32xf32, #tpu.memory_space<vmem>>, %arg15: memref<1x1x32xf32, #tpu.memory_space<vmem>>, %arg16: memref<8x32xf32, #tpu.memory_space<vmem>>) attributes {dimension_semantics = [#tpu.dimension_semantics<parallel>, #tpu.dimension_semantics<arbitrary>], iteration_bounds = array<i64: 2, 2>, scalar_prefetch = 1 : i64, scratch_operands = 0 : i64, tpu.core_type = #tpu.core_type<tc>, window_params = [{transform_indices = @transform_0, window_bounds = array<i64: 8, 32>}, {transform_indices = @transform_1, window_bounds = array<i64: 1, 32, 96>}, {transform_indices = @transform_2, window_bounds = array<i64: 1, 1, 96>}, {transform_indices = @transform_3, window_bounds = array<i64: 1, 32, 32>}, {transform_indices = @transform_4, window_bounds = array<i64: 1, 1, 32>}, {transform_indices = @transform_5, window_bounds = array<i64: 1, 1, 32>}, {transform_indices = @transform_6, window_bounds = array<i64: 1, 1, 32>}, {transform_indices = @transform_7, window_bounds = array<i64: 1, 32, 64>}, {transform_indices = @transform_8, window_bounds = array<i64: 1, 1, 64>}, {transform_indices = @transform_9, window_bounds = array<i64: 1, 64, 32>}, {transform_indices = @transform_10, window_bounds = array<i64: 1, 1, 32>}, {transform_indices = @transform_11, window_bounds = array<i64: 1, 1, 32>}, {transform_indices = @transform_12, window_bounds = array<i64: 1, 1, 32>}, {transform_indices = @transform_13, window_bounds = array<i64: 8, 32>}]} {
    %c0_i32 = arith.constant 0 : i32
    %0 = arith.cmpi eq, %arg1, %c0_i32 : i32
    %1 = arith.extui %0 : i1 to i32
    %c0_i32_0 = arith.constant 0 : i32
    %2 = arith.cmpi ne, %1, %c0_i32_0 : i32
    scf.if %2 {
      %c0_60 = arith.constant 0 : index
      %c0_61 = arith.constant 0 : index
      %138 = vector.load %arg3[%c0_60, %c0_61] : memref<8x32xf32, #tpu.memory_space<vmem>>, vector<8x32xf32>
      %c0_62 = arith.constant 0 : index
      %c0_63 = arith.constant 0 : index
      %139 = vector.load %arg16[%c0_62, %c0_63] : memref<8x32xf32, #tpu.memory_space<vmem>>, vector<8x32xf32>
      tpu.vector_store %arg16[%c0_62, %c0_63], %138 {strides = array<i32>} : memref<8x32xf32, #tpu.memory_space<vmem>>, vector<8x32xf32>,
    } else {
    }
    %c0 = arith.constant 0 : index
    %c0_1 = arith.constant 0 : index
    %3 = vector.load %arg16[%c0, %c0_1] : memref<8x32xf32, #tpu.memory_space<vmem>>, vector<8x32xf32>
    %4 = arith.truncf %3 : vector<8x32xf32> to vector<8x32xbf16>
    %c0_2 = arith.constant 0 : index
    %c0_3 = arith.constant 0 : index
    %c0_4 = arith.constant 0 : index
    %5 = vector.load %arg4[%c0_2, %c0_3, %c0_4] : memref<1x32x96xbf16, #tpu.memory_space<vmem>>, vector<1x32x96xbf16>
    %6 = vector.shape_cast %5 : vector<1x32x96xbf16> to vector<32x96xbf16>
    %cst = arith.constant dense<0.000000e+00> : vector<8x96xf32>
    %7 = tpu.matmul %4, %6, %cst {dimension_numbers = #tpu.dot_dimension_numbers<[1], [0], [0], [1], [0, 0, 1, 1], [], []>} : vector<8x32xbf16>, vector<32x96xbf16>, vector<8x96xf32> -> vector<8x96xf32>
    %c0_5 = arith.constant 0 : index
    %c0_6 = arith.constant 0 : index
    %c0_7 = arith.constant 0 : index
    %8 = vector.load %arg5[%c0_5, %c0_6, %c0_7] : memref<1x1x96xf32, #tpu.memory_space<vmem>>, vector<1x1x96xf32>
    %9 = vector.shape_cast %8 : vector<1x1x96xf32> to vector<1x96xf32>
    %10 = vector.broadcast %9 : vector<1x96xf32> to vector<8x96xf32>
    %11 = arith.addf %7, %10 : vector<8x96xf32>
    %12 = vector.extract_strided_slice %11 {offsets = [0, 0], sizes = [8, 32], strides = [1, 1]} : vector<8x96xf32> to vector<8x32xf32>
    %13 = vector.extract_strided_slice %11 {offsets = [0, 32], sizes = [8, 32], strides = [1, 1]} : vector<8x96xf32> to vector<8x32xf32>
    %14 = vector.extract_strided_slice %11 {offsets = [0, 64], sizes = [8, 32], strides = [1, 1]} : vector<8x96xf32> to vector<8x32xf32>
    %15 = vector.shape_cast %12 : vector<8x32xf32> to vector<1x8x2x16xf32>
    %16 = tpu.transpose %15, [0, 2, 1, 3] : vector<1x8x2x16xf32> -> vector<1x2x8x16xf32>
    %17 = vector.shape_cast %16 : vector<1x2x8x16xf32> to vector<2x8x16xf32>
    %18 = arith.truncf %17 : vector<2x8x16xf32> to vector<2x8x16xbf16>
    %19 = vector.shape_cast %13 : vector<8x32xf32> to vector<1x8x2x16xf32>
    %20 = tpu.transpose %19, [0, 2, 1, 3] : vector<1x8x2x16xf32> -> vector<1x2x8x16xf32>
    %21 = vector.shape_cast %20 : vector<1x2x8x16xf32> to vector<2x8x16xf32>
    %22 = arith.truncf %21 : vector<2x8x16xf32> to vector<2x8x16xbf16>
    %23 = vector.shape_cast %14 : vector<8x32xf32> to vector<1x8x2x16xf32>
    %24 = tpu.transpose %23, [0, 2, 1, 3] : vector<1x8x2x16xf32> -> vector<1x2x8x16xf32>
    %25 = vector.shape_cast %24 : vector<1x2x8x16xf32> to vector<2x8x16xf32>
    %26 = arith.truncf %25 : vector<2x8x16xf32> to vector<2x8x16xbf16>
    "tpu.trace_start"() <{level = 10 : i32, message = "gqd,gkd->gqk"}> : () -> ()
    %cst_8 = arith.constant dense<0.000000e+00> : vector<2x8x8xf32>
    %27 = tpu.matmul %18, %22, %cst_8 {dimension_numbers = #tpu.dot_dimension_numbers<[2], [2], [1], [1], [0, 0, 0, 1, 1, 1], [0], [0]>} : vector<2x8x16xbf16>, vector<2x8x16xbf16>, vector<2x8x8xf32> -> vector<2x8x8xf32>
    "tpu.trace_stop"() : () -> ()
    %c1_i32 = arith.constant 1 : i32
    %28 = arith.muli %arg0, %c1_i32 : i32
    %c0_i32_9 = arith.constant 0 : i32
    %29 = arith.addi %28, %c0_i32_9 : i32
    %30 = arith.index_cast %29 : i32 to index
    %31 = memref.load %arg2[%30] : memref<2xi32, #tpu.memory_space<smem>>
    %32 = vector.broadcast %31 : i32 to vector<1xi32>
    %33 = vector.broadcast %31 : i32 to vector<1xi32>
    %34 = tpu.concatenate %32, %33 in 0 : vector<1xi32>, vector<1xi32> -> vector<2xi32>
    %35 = vector.shape_cast %34 : vector<2xi32> to vector<2x1x1xi32>
    %36 = tpu.iota {dimensions = array<i32: 2>} : vector<1x8x8xi32>
    %37 = vector.broadcast %36 : vector<1x8x8xi32> to vector<2x8x8xi32>
    %38 = vector.broadcast %35 : vector<2x1x1xi32> to vector<2x8x8xi32>
    %39 = arith.cmpi slt, %37, %38 : vector<2x8x8xi32>
    %cst_10 = arith.constant -1.000000e+06 : f32
    %40 = vector.broadcast %cst_10 : f32 to vector<2x8x8xf32>
    %41 = arith.select %39, %27, %40 : vector<2x8x8xi1>, vector<2x8x8xf32>
    %cst_11 = arith.constant dense<0xFF800000> : vector<2x8xf32>
    %42 = vector.multi_reduction <maximumf>, %41, %cst_11 [2] : vector<2x8x8xf32> to vector<2x8xf32>
    %43 = vector.shape_cast %42 : vector<2x8xf32> to vector<2x8x1xf32>
    %44 = vector.broadcast %43 : vector<2x8x1xf32> to vector<2x8x8xf32>
    %45 = arith.subf %41, %44 : vector<2x8x8xf32>
    %46 = math.exp %45 : vector<2x8x8xf32>
    %cst_12 = arith.constant dense<0.000000e+00> : vector<2x8xf32>
    %47 = vector.multi_reduction <add>, %46, %cst_12 [2] : vector<2x8x8xf32> to vector<2x8xf32>
    %48 = vector.shape_cast %47 : vector<2x8xf32> to vector<2x8x1xf32>
    %49 = tpu.reciprocal %48 {approx = true} : vector<2x8x1xf32> -> vector<2x8x1xf32>
    %50 = vector.broadcast %49 : vector<2x8x1xf32> to vector<2x8x8xf32>
    %51 = arith.mulf %46, %50 : vector<2x8x8xf32>
    %52 = arith.truncf %51 : vector<2x8x8xf32> to vector<2x8x8xbf16>
    "tpu.trace_start"() <{level = 10 : i32, message = "gqk,gkd->gqd"}> : () -> ()
    %cst_13 = arith.constant dense<0.000000e+00> : vector<2x8x16xf32>
    %53 = tpu.matmul %52, %26, %cst_13 {dimension_numbers = #tpu.dot_dimension_numbers<[2], [1], [1], [2], [0, 0, 0, 1, 1, 2], [0], [0]>} : vector<2x8x8xbf16>, vector<2x8x16xbf16>, vector<2x8x16xf32> -> vector<2x8x16xf32>
    "tpu.trace_stop"() : () -> ()
    %54 = vector.shape_cast %53 : vector<2x8x16xf32> to vector<1x2x8x16xf32>
    %55 = tpu.transpose %54, [0, 2, 1, 3] : vector<1x2x8x16xf32> -> vector<1x8x2x16xf32>
    %56 = vector.shape_cast %55 : vector<1x8x2x16xf32> to vector<8x32xf32>
    %57 = arith.truncf %56 : vector<8x32xf32> to vector<8x32xbf16>
    %c0_14 = arith.constant 0 : index
    %c0_15 = arith.constant 0 : index
    %c0_16 = arith.constant 0 : index
    %58 = vector.load %arg6[%c0_14, %c0_15, %c0_16] : memref<1x32x32xbf16, #tpu.memory_space<vmem>>, vector<1x32x32xbf16>
    %59 = vector.shape_cast %58 : vector<1x32x32xbf16> to vector<32x32xbf16>
    %cst_17 = arith.constant dense<0.000000e+00> : vector<8x32xf32>
    %60 = tpu.matmul %57, %59, %cst_17 {dimension_numbers = #tpu.dot_dimension_numbers<[1], [0], [0], [1], [0, 0, 1, 1], [], []>} : vector<8x32xbf16>, vector<32x32xbf16>, vector<8x32xf32> -> vector<8x32xf32>
    %c0_18 = arith.constant 0 : index
    %c0_19 = arith.constant 0 : index
    %c0_20 = arith.constant 0 : index
    %61 = vector.load %arg7[%c0_18, %c0_19, %c0_20] : memref<1x1x32xf32, #tpu.memory_space<vmem>>, vector<1x1x32xf32>
    %62 = vector.shape_cast %61 : vector<1x1x32xf32> to vector<1x32xf32>
    %63 = vector.broadcast %62 : vector<1x32xf32> to vector<8x32xf32>
    %64 = arith.addf %60, %63 : vector<8x32xf32>
    %65 = arith.addf %3, %64 : vector<8x32xf32>
    %c0_21 = arith.constant 0 : index
    %c0_22 = arith.constant 0 : index
    %c0_23 = arith.constant 0 : index
    %66 = vector.load %arg8[%c0_21, %c0_22, %c0_23] : memref<1x1x32xf32, #tpu.memory_space<vmem>>, vector<1x1x32xf32>
    %67 = vector.shape_cast %66 : vector<1x1x32xf32> to vector<1x32xf32>
    %c0_24 = arith.constant 0 : index
    %c0_25 = arith.constant 0 : index
    %c0_26 = arith.constant 0 : index
    %68 = vector.load %arg9[%c0_24, %c0_25, %c0_26] : memref<1x1x32xf32, #tpu.memory_space<vmem>>, vector<1x1x32xf32>
    %69 = vector.shape_cast %68 : vector<1x1x32xf32> to vector<1x32xf32>
    %cst_27 = arith.constant dense<0.000000e+00> : vector<8xf32>
    %70 = vector.multi_reduction <add>, %65, %cst_27 [1] : vector<8x32xf32> to vector<8xf32>
    %71 = vector.shape_cast %70 : vector<8xf32> to vector<8x1xf32>
    %cst_28 = arith.constant 3.200000e+01 : f32
    %72 = vector.broadcast %cst_28 : f32 to vector<8x1xf32>
    %73 = arith.divf %71, %72 : vector<8x1xf32>
    %74 = vector.broadcast %73 : vector<8x1xf32> to vector<8x32xf32>
    %75 = arith.subf %65, %74 : vector<8x32xf32>
    %76 = arith.mulf %75, %75 : vector<8x32xf32>
    %cst_29 = arith.constant dense<0.000000e+00> : vector<8xf32>
    %77 = vector.multi_reduction <add>, %76, %cst_29 [1] : vector<8x32xf32> to vector<8xf32>
    %78 = vector.shape_cast %77 : vector<8xf32> to vector<8x1xf32>
    %cst_30 = arith.constant 3.200000e+01 : f32
    %79 = vector.broadcast %cst_30 : f32 to vector<8x1xf32>
    %80 = arith.divf %78, %79 : vector<8x1xf32>
    %81 = vector.broadcast %73 : vector<8x1xf32> to vector<8x32xf32>
    %82 = arith.subf %65, %81 : vector<8x32xf32>
    %cst_31 = arith.constant 9.99999974E-6 : f32
    %83 = vector.broadcast %cst_31 : f32 to vector<8x1xf32>
    %84 = arith.addf %80, %83 : vector<8x1xf32>
    %85 = math.rsqrt %84 : vector<8x1xf32>
    %86 = vector.broadcast %85 : vector<8x1xf32> to vector<8x32xf32>
    %87 = arith.mulf %82, %86 : vector<8x32xf32>
    %88 = vector.broadcast %67 : vector<1x32xf32> to vector<8x32xf32>
    %89 = arith.mulf %87, %88 : vector<8x32xf32>
    %90 = vector.broadcast %69 : vector<1x32xf32> to vector<8x32xf32>
    %91 = arith.addf %89, %90 : vector<8x32xf32>
    %92 = arith.truncf %91 : vector<8x32xf32> to vector<8x32xbf16>
    %c0_32 = arith.constant 0 : index
    %c0_33 = arith.constant 0 : index
    %c0_34 = arith.constant 0 : index
    %93 = vector.load %arg10[%c0_32, %c0_33, %c0_34] : memref<1x32x64xbf16, #tpu.memory_space<vmem>>, vector<1x32x64xbf16>
    %94 = vector.shape_cast %93 : vector<1x32x64xbf16> to vector<32x64xbf16>
    %cst_35 = arith.constant dense<0.000000e+00> : vector<8x64xf32>
    %95 = tpu.matmul %92, %94, %cst_35 {dimension_numbers = #tpu.dot_dimension_numbers<[1], [0], [0], [1], [0, 0, 1, 1], [], []>} : vector<8x32xbf16>, vector<32x64xbf16>, vector<8x64xf32> -> vector<8x64xf32>
    %c0_36 = arith.constant 0 : index
    %c0_37 = arith.constant 0 : index
    %c0_38 = arith.constant 0 : index
    %96 = vector.load %arg11[%c0_36, %c0_37, %c0_38] : memref<1x1x64xf32, #tpu.memory_space<vmem>>, vector<1x1x64xf32>
    %97 = vector.shape_cast %96 : vector<1x1x64xf32> to vector<1x64xf32>
    %98 = vector.broadcast %97 : vector<1x64xf32> to vector<8x64xf32>
    %99 = arith.addf %95, %98 : vector<8x64xf32>
    %cst_39 = arith.constant 0.000000e+00 : f32
    %100 = vector.broadcast %cst_39 : f32 to vector<8x64xf32>
    %101 = arith.maximumf %99, %100 : vector<8x64xf32>
    %102 = arith.truncf %101 : vector<8x64xf32> to vector<8x64xbf16>
    %c0_40 = arith.constant 0 : index
    %c0_41 = arith.constant 0 : index
    %c0_42 = arith.constant 0 : index
    %103 = vector.load %arg12[%c0_40, %c0_41, %c0_42] : memref<1x64x32xbf16, #tpu.memory_space<vmem>>, vector<1x64x32xbf16>
    %104 = vector.shape_cast %103 : vector<1x64x32xbf16> to vector<64x32xbf16>
    %cst_43 = arith.constant dense<0.000000e+00> : vector<8x32xf32>
    %105 = tpu.matmul %102, %104, %cst_43 {dimension_numbers = #tpu.dot_dimension_numbers<[1], [0], [0], [1], [0, 0, 1, 1], [], []>} : vector<8x64xbf16>, vector<64x32xbf16>, vector<8x32xf32> -> vector<8x32xf32>
    %c0_44 = arith.constant 0 : index
    %c0_45 = arith.constant 0 : index
    %c0_46 = arith.constant 0 : index
    %106 = vector.load %arg13[%c0_44, %c0_45, %c0_46] : memref<1x1x32xf32, #tpu.memory_space<vmem>>, vector<1x1x32xf32>
    %107 = vector.shape_cast %106 : vector<1x1x32xf32> to vector<1x32xf32>
    %108 = vector.broadcast %107 : vector<1x32xf32> to vector<8x32xf32>
    %109 = arith.addf %105, %108 : vector<8x32xf32>
    %110 = arith.addf %91, %109 : vector<8x32xf32>
    %c0_47 = arith.constant 0 : index
    %c0_48 = arith.constant 0 : index
    %c0_49 = arith.constant 0 : index
    %111 = vector.load %arg14[%c0_47, %c0_48, %c0_49] : memref<1x1x32xf32, #tpu.memory_space<vmem>>, vector<1x1x32xf32>
    %112 = vector.shape_cast %111 : vector<1x1x32xf32> to vector<1x32xf32>
    %c0_50 = arith.constant 0 : index
    %c0_51 = arith.constant 0 : index
    %c0_52 = arith.constant 0 : index
    %113 = vector.load %arg15[%c0_50, %c0_51, %c0_52] : memref<1x1x32xf32, #tpu.memory_space<vmem>>, vector<1x1x32xf32>
    %114 = vector.shape_cast %113 : vector<1x1x32xf32> to vector<1x32xf32>
    %cst_53 = arith.constant dense<0.000000e+00> : vector<8xf32>
    %115 = vector.multi_reduction <add>, %110, %cst_53 [1] : vector<8x32xf32> to vector<8xf32>
    %116 = vector.shape_cast %115 : vector<8xf32> to vector<8x1xf32>
    %cst_54 = arith.constant 3.200000e+01 : f32
    %117 = vector.broadcast %cst_54 : f32 to vector<8x1xf32>
    %118 = arith.divf %116, %117 : vector<8x1xf32>
    %119 = vector.broadcast %118 : vector<8x1xf32> to vector<8x32xf32>
    %120 = arith.subf %110, %119 : vector<8x32xf32>
    %121 = arith.mulf %120, %120 : vector<8x32xf32>
    %cst_55 = arith.constant dense<0.000000e+00> : vector<8xf32>
    %122 = vector.multi_reduction <add>, %121, %cst_55 [1] : vector<8x32xf32> to vector<8xf32>
    %123 = vector.shape_cast %122 : vector<8xf32> to vector<8x1xf32>
    %cst_56 = arith.constant 3.200000e+01 : f32
    %124 = vector.broadcast %cst_56 : f32 to vector<8x1xf32>
    %125 = arith.divf %123, %124 : vector<8x1xf32>
    %126 = vector.broadcast %118 : vector<8x1xf32> to vector<8x32xf32>
    %127 = arith.subf %110, %126 : vector<8x32xf32>
    %cst_57 = arith.constant 9.99999974E-6 : f32
    %128 = vector.broadcast %cst_57 : f32 to vector<8x1xf32>
    %129 = arith.addf %125, %128 : vector<8x1xf32>
    %130 = math.rsqrt %129 : vector<8x1xf32>
    %131 = vector.broadcast %130 : vector<8x1xf32> to vector<8x32xf32>
    %132 = arith.mulf %127, %131 : vector<8x32xf32>
    %133 = vector.broadcast %112 : vector<1x32xf32> to vector<8x32xf32>
    %134 = arith.mulf %132, %133 : vector<8x32xf32>
    %135 = vector.broadcast %114 : vector<1x32xf32> to vector<8x32xf32>
    %136 = arith.addf %134, %135 : vector<8x32xf32>
    %c0_58 = arith.constant 0 : index
    %c0_59 = arith.constant 0 : index
    %137 = vector.load %arg16[%c0_58, %c0_59] : memref<8x32xf32, #tpu.memory_space<vmem>>, vector<8x32xf32>
    tpu.vector_store %arg16[%c0_58, %c0_59], %136 {strides = array<i32>} : memref<8x32xf32, #tpu.memory_space<vmem>>, vector<8x32xf32>,
    return
  }
  func.func @transform_0(%arg0: i32, %arg1: i32, %arg2: memref<2xi32, #tpu.memory_space<smem>>) -> (i32, i32) {
    %c0_i32 = arith.constant 0 : i32
    %c0_i32_0 = arith.constant 0 : i32
    return %arg0, %c0_i32 : i32, i32
  }
  func.func @transform_1(%arg0: i32, %arg1: i32, %arg2: memref<2xi32, #tpu.memory_space<smem>>) -> (i32, i32, i32) {
    %c0_i32 = arith.constant 0 : i32
    %c0_i32_0 = arith.constant 0 : i32
    %c0_i32_1 = arith.constant 0 : i32
    return %arg1, %c0_i32, %c0_i32_0 : i32, i32, i32
  }
  func.func @transform_2(%arg0: i32, %arg1: i32, %arg2: memref<2xi32, #tpu.memory_space<smem>>) -> (i32, i32, i32) {
    %c0_i32 = arith.constant 0 : i32
    %c0_i32_0 = arith.constant 0 : i32
    %c0_i32_1 = arith.constant 0 : i32
    return %arg1, %c0_i32, %c0_i32_0 : i32, i32, i32
  }
  func.func @transform_3(%arg0: i32, %arg1: i32, %arg2: memref<2xi32, #tpu.memory_space<smem>>) -> (i32, i32, i32) {
    %c0_i32 = arith.constant 0 : i32
    %c0_i32_0 = arith.constant 0 : i32
    %c0_i32_1 = arith.constant 0 : i32
    return %arg1, %c0_i32, %c0_i32_0 : i32, i32, i32
  }
  func.func @transform_4(%arg0: i32, %arg1: i32, %arg2: memref<2xi32, #tpu.memory_space<smem>>) -> (i32, i32, i32) {
    %c0_i32 = arith.constant 0 : i32
    %c0_i32_0 = arith.constant 0 : i32
    %c0_i32_1 = arith.constant 0 : i32
    return %arg1, %c0_i32, %c0_i32_0 : i32, i32, i32
  }
  func.func @transform_5(%arg0: i32, %arg1: i32, %arg2: memref<2xi32, #tpu.memory_space<smem>>) -> (i32, i32, i32) {
    %c0_i32 = arith.constant 0 : i32
    %c0_i32_0 = arith.constant 0 : i32
    %c0_i32_1 = arith.constant 0 : i32
    return %arg1, %c0_i32, %c0_i32_0 : i32, i32, i32
  }
  func.func @transform_6(%arg0: i32, %arg1: i32, %arg2: memref<2xi32, #tpu.memory_space<smem>>) -> (i32, i32, i32) {
    %c0_i32 = arith.constant 0 : i32
    %c0_i32_0 = arith.constant 0 : i32
    %c0_i32_1 = arith.constant 0 : i32
    return %arg1, %c0_i32, %c0_i32_0 : i32, i32, i32
  }
  func.func @transform_7(%arg0: i32, %arg1: i32, %arg2: memref<2xi32, #tpu.memory_space<smem>>) -> (i32, i32, i32) {
    %c0_i32 = arith.constant 0 : i32
    %c0_i32_0 = arith.constant 0 : i32
    %c0_i32_1 = arith.constant 0 : i32
    return %arg1, %c0_i32, %c0_i32_0 : i32, i32, i32
  }
  func.func @transform_8(%arg0: i32, %arg1: i32, %arg2: memref<2xi32, #tpu.memory_space<smem>>) -> (i32, i32, i32) {
    %c0_i32 = arith.constant 0 : i32
    %c0_i32_0 = arith.constant 0 : i32
    %c0_i32_1 = arith.constant 0 : i32
    return %arg1, %c0_i32, %c0_i32_0 : i32, i32, i32
  }
  func.func @transform_9(%arg0: i32, %arg1: i32, %arg2: memref<2xi32, #tpu.memory_space<smem>>) -> (i32, i32, i32) {
    %c0_i32 = arith.constant 0 : i32
    %c0_i32_0 = arith.constant 0 : i32
    %c0_i32_1 = arith.constant 0 : i32
    return %arg1, %c0_i32, %c0_i32_0 : i32, i32, i32
  }
  func.func @transform_10(%arg0: i32, %arg1: i32, %arg2: memref<2xi32, #tpu.memory_space<smem>>) -> (i32, i32, i32) {
    %c0_i32 = arith.constant 0 : i32
    %c0_i32_0 = arith.constant 0 : i32
    %c0_i32_1 = arith.constant 0 : i32
    return %arg1, %c0_i32, %c0_i32_0 : i32, i32, i32
  }
  func.func @transform_11(%arg0: i32, %arg1: i32, %arg2: memref<2xi32, #tpu.memory_space<smem>>) -> (i32, i32, i32) {
    %c0_i32 = arith.constant 0 : i32
    %c0_i32_0 = arith.constant 0 : i32
    %c0_i32_1 = arith.constant 0 : i32
    return %arg1, %c0_i32, %c0_i32_0 : i32, i32, i32
  }
  func.func @transform_12(%arg0: i32, %arg1: i32, %arg2: memref<2xi32, #tpu.memory_space<smem>>) -> (i32, i32, i32) {
    %c0_i32 = arith.constant 0 : i32
    %c0_i32_0 = arith.constant 0 : i32
    %c0_i32_1 = arith.constant 0 : i32
    return %arg1, %c0_i32, %c0_i32_0 : i32, i32, i32
  }
  func.func @transform_13(%arg0: i32, %arg1: i32, %arg2: memref<2xi32, #tpu.memory_space<smem>>) -> (i32, i32) {
    %c0_i32 = arith.constant 0 : i32
    %c0_i32_0 = arith.constant 0 : i32
    return %arg0, %c0_i32 : i32, i32
  }
}

</mosaic_0001>

<llo_original>
// kernel: tpu_custom_call.1
$region0: #{tpu_custom_call.1}
  #allocation0 [shape = 'u32[]', space=smem, size = 0x4, offset = 0x4, fixed_abs, tag = 'smem constant byte address 0x4 - core index']
  #allocation1 [shape = 'u32[144,128]{1,0:T(1,128)}', space=vmem, size = 0x12000, scoped, tag = 'internal scratch']
  #allocation2 [shape = 's32[1]{0}', space=sflag, size = 0x4, scoped, tag = 'scoped memory for tpu_custom_call.1']
  #allocation3 [shape = 'u8[512]{0}', space=smem, size = 0x200, scoped, tag = 'prefetched SMEM operand 0']
  %s0 = inlined_call_operand.hbm [shape: s32[2], index: 0, kind: input, shape index: {}]
  %s1 = inlined_call_operand.hbm [shape: f32[16,32], index: 1, kind: input, shape index: {}]
  %s2 = inlined_call_operand.vmem [shape: bf16[2,32,96], index: 2, kind: input, shape index: {}]
  %s3 = inlined_call_operand.vmem [shape: f32[2,1,96], index: 3, kind: input, shape index: {}]
  %s4 = inlined_call_operand.vmem [shape: bf16[2,32,32], index: 4, kind: input, shape index: {}]
  %s5 = inlined_call_operand.vmem [shape: f32[2,1,32], index: 5, kind: input, shape index: {}]
  %s6 = inlined_call_operand.hbm [shape: f32[2,1,32], index: 6, kind: input, shape index: {}]
  %s7 = inlined_call_operand.hbm [shape: f32[2,1,32], index: 7, kind: input, shape index: {}]
  %s8 = inlined_call_operand.vmem [shape: bf16[2,32,64], index: 8, kind: input, shape index: {}]
  %s9 = inlined_call_operand.hbm [shape: f32[2,1,64], index: 9, kind: input, shape index: {}]
  %s10 = inlined_call_operand.vmem [shape: bf16[2,64,32], index: 10, kind: input, shape index: {}]
  %s11 = inlined_call_operand.vmem [shape: f32[2,1,32], index: 11, kind: input, shape index: {}]
  %s12 = inlined_call_operand.vmem [shape: f32[2,1,32], index: 12, kind: input, shape index: {}]
  %s13 = inlined_call_operand.vmem [shape: f32[2,1,32], index: 13, kind: input, shape index: {}]
  %s14 = inlined_call_operand.hbm [shape: f32[16,32], index: 14, kind: output, shape index: {}]
  %s15 = sld [smem:[#allocation0]]
  $region105: #{tpu_custom_call.1} parent=0
    _
  %s17 = ssub.s32 1, %s15
  %s18 = scalar_select 0, %s17, %s15
  %20 = dma.hbm_to_smem %s0, 16, [#allocation3], [#allocation2]
  %21 = dma.done [#allocation2], 16
  %22 = sfence
  $region1: #{tpu_custom_call.1} parent=0
    #allocation4 [shape = 'u8[8192]{0}', space=vmem, size = 0x2000, scoped, tag = 'input window, operand 1']
    #allocation5 [shape = 's32[2]{0}', space=sflag, size = 0x8, scoped, tag = 'scoped memory for tpu_custom_call.1']
    #allocation6 [shape = 's32[2]{0}', space=sflag, size = 0x8, scoped, tag = 'scoped memory for tpu_custom_call.1']
    #allocation7 [shape = 'u8[1024]{0}', space=vmem, size = 0x400, scoped, tag = 'input window, operand 6']
    #allocation8 [shape = 's32[2]{0}', space=sflag, size = 0x8, scoped, tag = 'scoped memory for tpu_custom_call.1']
    #allocation9 [shape = 'u8[1024]{0}', space=vmem, size = 0x400, scoped, tag = 'input window, operand 7']
    #allocation10 [shape = 'u8[1024]{0}', space=vmem, size = 0x400, scoped, tag = 'input window, operand 9']
    #allocation11 [shape = 's32[2]{0}', space=sflag, size = 0x8, scoped, tag = 'scoped memory for tpu_custom_call.1']
    #allocation12 [shape = 'u8[8192]{0}', space=vmem, size = 0x2000, scoped, tag = 'output window, operand 0']
    %23 = vsyncpa [#allocation5], 0
    %s24 = scalar_lea.sflag [#allocation5], 1
    %25 = vsyncpa %s24, 0
    %26 = vsyncpa [#allocation8], 0
    %s27 = scalar_lea.sflag [#allocation8], 1
    %28 = vsyncpa %s27, 0
    %29 = vsyncpa [#allocation11], 0
    %s30 = scalar_lea.sflag [#allocation11], 1
    %31 = vsyncpa %s30, 0
    %32 = vsyncpa [#allocation6], 0
    %s33 = scalar_lea.sflag [#allocation6], 1
    %34 = vsyncpa %s33, 0
    loop: start=0, step=1, limit=6
    $region2: #{tpu_custom_call.1} parent=1 // loop_pre_header
      _
    $region3: #{tpu_custom_call.1} parent=1 // loop_header
      %s36 = sphi 0, %s40
      %p37 = scmp.ge.s32.totalorder %s36, 6
      %s43 = sphi 0, %s55
      %s44 = sphi 0, %s51
      %s45 = sphi 0, %s43
      %s46 = sphi 0, %s44
      %s47 = sphi 0, %s45
      %s48 = sphi 0, %s46
      %s58 = sphi 0, %s60
      %s61 = sphi 0, %s58
      %s62 = sphi 0, %s61
      %s78 = sphi 0, %s62
      %s84 = sphi 0, %s86
      %s87 = sphi 0, %s84
      %s88 = sphi 0, %s87
      %s104 = sphi 0, %s88
      %s110 = sphi 0, %s112
      %s113 = sphi 0, %s110
      %s114 = sphi 0, %s113
      %s130 = sphi 0, %s114
      %s136 = sphi 0, %s138
      %s139 = sphi 0, %s136
      %s140 = sphi 0, %s139
      %s156 = sphi 0, %s140
      %s162 = sphi 0, %s164
      %s165 = sphi 0, %s162
      %s166 = sphi 0, %s165
      %s182 = sphi 0, %s166
      %s188 = sphi 0, %s190
      %s191 = sphi 0, %s188
      %s192 = sphi 0, %s191
      %s208 = sphi 0, %s192
      %s214 = sphi 0, %s216
      %s217 = sphi 0, %s214
      %s218 = sphi 0, %s217
      %s234 = sphi 0, %s218
      %s240 = sphi 0, %s242
      %s243 = sphi 0, %s240
      %s244 = sphi 0, %s243
      %s260 = sphi 0, %s244
      %s266 = sphi 0, %s268
      %s269 = sphi 0, %s266
      %s270 = sphi 0, %s269
      %s286 = sphi 0, %s270
      %s292 = sphi 0, %s294
      %s295 = sphi 0, %s292
      %s296 = sphi 0, %s295
      %s312 = sphi 0, %s296
      %s318 = sphi 0, %s320
      %s321 = sphi 0, %s318
      %s322 = sphi 0, %s321
      %s338 = sphi 0, %s322
      %s344 = sphi 0, %s346
      %s347 = sphi 0, %s344
      %s348 = sphi 0, %s347
      %s364 = sphi 0, %s348
      %s370 = sphi 0, %s372
      %s373 = sphi 0, %s370
      %s374 = sphi 0, %s373
      %s390 = sphi 0, %s374
      %s396 = sphi 0, %s398
      %s399 = sphi 0, %s396
      %s400 = sphi 0, %s399
      %s416 = sphi 0, %s400
    $region4: #{tpu_custom_call.1} parent=1 // loop_header_branch
      %39 = sbr.rel (%p37) target = $region8
    $region5: #{tpu_custom_call.1} parent=1 // loop_body
      %s41 = ssub.s32 %s36, 1
      %s42 = ssub.s32 %s36, 2
      %s49 = sadd.s32 1, %s44
      %p50 = scmp.ge.s32.totalorder %s49, 2
      %s51 = scalar_select %p50, 0, %s49
      %s52 = sadd.s32 1, %s43
      %s53 = scalar_select %p50, %s52, %s43
      %p54 = scmp.ge.s32.totalorder %s53, 2
      %s55 = scalar_select %p54, 0, %s53
      %s56 = ssub.s32 %s43, %s55
      %p57 = scmp.eq.s32.totalorder %s56, 0
      %s59 = sadd.s32 %s58, 1
      %s60 = scalar_select %p57, %s58, %s59
      %p63 = pneg %p57
      %p64 = scmp.eq.s32.totalorder %s36, 3
      %p65 = por %p63, %p64
      %p66 = scmp.ne.s32.totalorder %s58, %s61
      %p67 = scmp.eq.s32.totalorder %s36, 0
      %p68 = por %p66, %p67
      %p69 = scmp.ne.s32.totalorder %s58, %s61
      %p70 = scmp.eq.s32.totalorder %s41, 3
      %p71 = por %p69, %p70
      %p72 = scmp.ne.s32.totalorder %s61, %s62
      %p73 = scmp.eq.s32.totalorder %s41, 0
      %p74 = por %p72, %p73
      %p75 = scmp.ne.s32.totalorder %s61, %s62
      %p76 = scmp.eq.s32.totalorder %s42, 3
      %p77 = por %p75, %p76
      %p79 = scmp.ne.s32.totalorder %s62, %s78
      %p80 = scmp.eq.s32.totalorder %s42, 0
      %p81 = por %p79, %p80
      %s82 = ssub.s32 %s44, %s51
      %p83 = scmp.eq.s32.totalorder %s82, 0
      %s85 = sadd.s32 %s84, 1
      %s86 = scalar_select %p83, %s84, %s85
      %p89 = pneg %p83
      %p90 = scmp.eq.s32.totalorder %s36, 3
      %p91 = por %p89, %p90
      %p92 = scmp.ne.s32.totalorder %s84, %s87
      %p93 = scmp.eq.s32.totalorder %s36, 0
      %p94 = por %p92, %p93
      %p95 = scmp.ne.s32.totalorder %s84, %s87
      %p96 = scmp.eq.s32.totalorder %s41, 3
      %p97 = por %p95, %p96
      %p98 = scmp.ne.s32.totalorder %s87, %s88
      %p99 = scmp.eq.s32.totalorder %s41, 0
      %p100 = por %p98, %p99
      %p101 = scmp.ne.s32.totalorder %s87, %s88
      %p102 = scmp.eq.s32.totalorder %s42, 3
      %p103 = por %p101, %p102
      %p105 = scmp.ne.s32.totalorder %s88, %s104
      %p106 = scmp.eq.s32.totalorder %s42, 0
      %p107 = por %p105, %p106
      %s108 = ssub.s32 %s44, %s51
      %p109 = scmp.eq.s32.totalorder %s108, 0
      %s111 = sadd.s32 %s110, 1
      %s112 = scalar_select %p109, %s110, %s111
      %p115 = pneg %p109
      %p116 = scmp.eq.s32.totalorder %s36, 3
      %p117 = por %p115, %p116
      %p118 = scmp.ne.s32.totalorder %s110, %s113
      %p119 = scmp.eq.s32.totalorder %s36, 0
      %p120 = por %p118, %p119
      %p121 = scmp.ne.s32.totalorder %s110, %s113
      %p122 = scmp.eq.s32.totalorder %s41, 3
      %p123 = por %p121, %p122
      %p124 = scmp.ne.s32.totalorder %s113, %s114
      %p125 = scmp.eq.s32.totalorder %s41, 0
      %p126 = por %p124, %p125
      %p127 = scmp.ne.s32.totalorder %s113, %s114
      %p128 = scmp.eq.s32.totalorder %s42, 3
      %p129 = por %p127, %p128
      %p131 = scmp.ne.s32.totalorder %s114, %s130
      %p132 = scmp.eq.s32.totalorder %s42, 0
      %p133 = por %p131, %p132
      %s134 = ssub.s32 %s44, %s51
      %p135 = scmp.eq.s32.totalorder %s134, 0
      %s137 = sadd.s32 %s136, 1
      %s138 = scalar_select %p135, %s136, %s137
      %p141 = pneg %p135
      %p142 = scmp.eq.s32.totalorder %s36, 3
      %p143 = por %p141, %p142
      %p144 = scmp.ne.s32.totalorder %s136, %s139
      %p145 = scmp.eq.s32.totalorder %s36, 0
      %p146 = por %p144, %p145
      %p147 = scmp.ne.s32.totalorder %s136, %s139
      %p148 = scmp.eq.s32.totalorder %s41, 3
      %p149 = por %p147, %p148
      %p150 = scmp.ne.s32.totalorder %s139, %s140
      %p151 = scmp.eq.s32.totalorder %s41, 0
      %p152 = por %p150, %p151
      %p153 = scmp.ne.s32.totalorder %s139, %s140
      %p154 = scmp.eq.s32.totalorder %s42, 3
      %p155 = por %p153, %p154
      %p157 = scmp.ne.s32.totalorder %s140, %s156
      %p158 = scmp.eq.s32.totalorder %s42, 0
      %p159 = por %p157, %p158
      %s160 = ssub.s32 %s44, %s51
      %p161 = scmp.eq.s32.totalorder %s160, 0
      %s163 = sadd.s32 %s162, 1
      %s164 = scalar_select %p161, %s162, %s163
      %p167 = pneg %p161
      %p168 = scmp.eq.s32.totalorder %s36, 3
      %p169 = por %p167, %p168
      %p170 = scmp.ne.s32.totalorder %s162, %s165
      %p171 = scmp.eq.s32.totalorder %s36, 0
      %p172 = por %p170, %p171
      %p173 = scmp.ne.s32.totalorder %s162, %s165
      %p174 = scmp.eq.s32.totalorder %s41, 3
      %p175 = por %p173, %p174
      %p176 = scmp.ne.s32.totalorder %s165, %s166
      %p177 = scmp.eq.s32.totalorder %s41, 0
      %p178 = por %p176, %p177
      %p179 = scmp.ne.s32.totalorder %s165, %s166
      %p180 = scmp.eq.s32.totalorder %s42, 3
      %p181 = por %p179, %p180
      %p183 = scmp.ne.s32.totalorder %s166, %s182
      %p184 = scmp.eq.s32.totalorder %s42, 0
      %p185 = por %p183, %p184
      %s186 = ssub.s32 %s44, %s51
      %p187 = scmp.eq.s32.totalorder %s186, 0
      %s189 = sadd.s32 %s188, 1
      %s190 = scalar_select %p187, %s188, %s189
      %p193 = pneg %p187
      %p194 = scmp.eq.s32.totalorder %s36, 3
      %p195 = por %p193, %p194
      %p196 = scmp.ne.s32.totalorder %s188, %s191
      %p197 = scmp.eq.s32.totalorder %s36, 0
      %p198 = por %p196, %p197
      %p199 = scmp.ne.s32.totalorder %s188, %s191
      %p200 = scmp.eq.s32.totalorder %s41, 3
      %p201 = por %p199, %p200
      %p202 = scmp.ne.s32.totalorder %s191, %s192
      %p203 = scmp.eq.s32.totalorder %s41, 0
      %p204 = por %p202, %p203
      %p205 = scmp.ne.s32.totalorder %s191, %s192
      %p206 = scmp.eq.s32.totalorder %s42, 3
      %p207 = por %p205, %p206
      %p209 = scmp.ne.s32.totalorder %s192, %s208
      %p210 = scmp.eq.s32.totalorder %s42, 0
      %p211 = por %p209, %p210
      %s212 = ssub.s32 %s44, %s51
      %p213 = scmp.eq.s32.totalorder %s212, 0
      %s215 = sadd.s32 %s214, 1
      %s216 = scalar_select %p213, %s214, %s215
      %p219 = pneg %p213
      %p220 = scmp.eq.s32.totalorder %s36, 3
      %p221 = por %p219, %p220
      %p222 = scmp.ne.s32.totalorder %s214, %s217
      %p223 = scmp.eq.s32.totalorder %s36, 0
      %p224 = por %p222, %p223
      %p225 = scmp.ne.s32.totalorder %s214, %s217
      %p226 = scmp.eq.s32.totalorder %s41, 3
      %p227 = por %p225, %p226
      %p228 = scmp.ne.s32.totalorder %s217, %s218
      %p229 = scmp.eq.s32.totalorder %s41, 0
      %p230 = por %p228, %p229
      %p231 = scmp.ne.s32.totalorder %s217, %s218
      %p232 = scmp.eq.s32.totalorder %s42, 3
      %p233 = por %p231, %p232
      %p235 = scmp.ne.s32.totalorder %s218, %s234
      %p236 = scmp.eq.s32.totalorder %s42, 0
      %p237 = por %p235, %p236
      %s238 = ssub.s32 %s44, %s51
      %p239 = scmp.eq.s32.totalorder %s238, 0
      %s241 = sadd.s32 %s240, 1
      %s242 = scalar_select %p239, %s240, %s241
      %p245 = pneg %p239
      %p246 = scmp.eq.s32.totalorder %s36, 3
      %p247 = por %p245, %p246
      %p248 = scmp.ne.s32.totalorder %s240, %s243
      %p249 = scmp.eq.s32.totalorder %s36, 0
      %p250 = por %p248, %p249
      %p251 = scmp.ne.s32.totalorder %s240, %s243
      %p252 = scmp.eq.s32.totalorder %s41, 3
      %p253 = por %p251, %p252
      %p254 = scmp.ne.s32.totalorder %s243, %s244
      %p255 = scmp.eq.s32.totalorder %s41, 0
      %p256 = por %p254, %p255
      %p257 = scmp.ne.s32.totalorder %s243, %s244
      %p258 = scmp.eq.s32.totalorder %s42, 3
      %p259 = por %p257, %p258
      %p261 = scmp.ne.s32.totalorder %s244, %s260
      %p262 = scmp.eq.s32.totalorder %s42, 0
      %p263 = por %p261, %p262
      %s264 = ssub.s32 %s44, %s51
      %p265 = scmp.eq.s32.totalorder %s264, 0
      %s267 = sadd.s32 %s266, 1
      %s268 = scalar_select %p265, %s266, %s267
      %p271 = pneg %p265
      %p272 = scmp.eq.s32.totalorder %s36, 3
      %p273 = por %p271, %p272
      %p274 = scmp.ne.s32.totalorder %s266, %s269
      %p275 = scmp.eq.s32.totalorder %s36, 0
      %p276 = por %p274, %p275
      %p277 = scmp.ne.s32.totalorder %s266, %s269
      %p278 = scmp.eq.s32.totalorder %s41, 3
      %p279 = por %p277, %p278
      %p280 = scmp.ne.s32.totalorder %s269, %s270
      %p281 = scmp.eq.s32.totalorder %s41, 0
      %p282 = por %p280, %p281
      %p283 = scmp.ne.s32.totalorder %s269, %s270
      %p284 = scmp.eq.s32.totalorder %s42, 3
      %p285 = por %p283, %p284
      %p287 = scmp.ne.s32.totalorder %s270, %s286
      %p288 = scmp.eq.s32.totalorder %s42, 0
      %p289 = por %p287, %p288
      %s290 = ssub.s32 %s44, %s51
      %p291 = scmp.eq.s32.totalorder %s290, 0
      %s293 = sadd.s32 %s292, 1
      %s294 = scalar_select %p291, %s292, %s293
      %p297 = pneg %p291
      %p298 = scmp.eq.s32.totalorder %s36, 3
      %p299 = por %p297, %p298
      %p300 = scmp.ne.s32.totalorder %s292, %s295
      %p301 = scmp.eq.s32.totalorder %s36, 0
      %p302 = por %p300, %p301
      %p303 = scmp.ne.s32.totalorder %s292, %s295
      %p304 = scmp.eq.s32.totalorder %s41, 3
      %p305 = por %p303, %p304
      %p306 = scmp.ne.s32.totalorder %s295, %s296
      %p307 = scmp.eq.s32.totalorder %s41, 0
      %p308 = por %p306, %p307
      %p309 = scmp.ne.s32.totalorder %s295, %s296
      %p310 = scmp.eq.s32.totalorder %s42, 3
      %p311 = por %p309, %p310
      %p313 = scmp.ne.s32.totalorder %s296, %s312
      %p314 = scmp.eq.s32.totalorder %s42, 0
      %p315 = por %p313, %p314
      %s316 = ssub.s32 %s44, %s51
      %p317 = scmp.eq.s32.totalorder %s316, 0
      %s319 = sadd.s32 %s318, 1
      %s320 = scalar_select %p317, %s318, %s319
      %p323 = pneg %p317
      %p324 = scmp.eq.s32.totalorder %s36, 3
      %p325 = por %p323, %p324
      %p326 = scmp.ne.s32.totalorder %s318, %s321
      %p327 = scmp.eq.s32.totalorder %s36, 0
      %p328 = por %p326, %p327
      %p329 = scmp.ne.s32.totalorder %s318, %s321
      %p330 = scmp.eq.s32.totalorder %s41, 3
      %p331 = por %p329, %p330
      %p332 = scmp.ne.s32.totalorder %s321, %s322
      %p333 = scmp.eq.s32.totalorder %s41, 0
      %p334 = por %p332, %p333
      %p335 = scmp.ne.s32.totalorder %s321, %s322
      %p336 = scmp.eq.s32.totalorder %s42, 3
      %p337 = por %p335, %p336
      %p339 = scmp.ne.s32.totalorder %s322, %s338
      %p340 = scmp.eq.s32.totalorder %s42, 0
      %p341 = por %p339, %p340
      %s342 = ssub.s32 %s44, %s51
      %p343 = scmp.eq.s32.totalorder %s342, 0
      %s345 = sadd.s32 %s344, 1
      %s346 = scalar_select %p343, %s344, %s345
      %p349 = pneg %p343
      %p350 = scmp.eq.s32.totalorder %s36, 3
      %p351 = por %p349, %p350
      %p352 = scmp.ne.s32.totalorder %s344, %s347
      %p353 = scmp.eq.s32.totalorder %s36, 0
      %p354 = por %p352, %p353
      %p355 = scmp.ne.s32.totalorder %s344, %s347
      %p356 = scmp.eq.s32.totalorder %s41, 3
      %p357 = por %p355, %p356
      %p358 = scmp.ne.s32.totalorder %s347, %s348
      %p359 = scmp.eq.s32.totalorder %s41, 0
      %p360 = por %p358, %p359
      %p361 = scmp.ne.s32.totalorder %s347, %s348
      %p362 = scmp.eq.s32.totalorder %s42, 3
      %p363 = por %p361, %p362
      %p365 = scmp.ne.s32.totalorder %s348, %s364
      %p366 = scmp.eq.s32.totalorder %s42, 0
      %p367 = por %p365, %p366
      %s368 = ssub.s32 %s44, %s51
      %p369 = scmp.eq.s32.totalorder %s368, 0
      %s371 = sadd.s32 %s370, 1
      %s372 = scalar_select %p369, %s370, %s371
      %p375 = pneg %p369
      %p376 = scmp.eq.s32.totalorder %s36, 3
      %p377 = por %p375, %p376
      %p378 = scmp.ne.s32.totalorder %s370, %s373
      %p379 = scmp.eq.s32.totalorder %s36, 0
      %p380 = por %p378, %p379
      %p381 = scmp.ne.s32.totalorder %s370, %s373
      %p382 = scmp.eq.s32.totalorder %s41, 3
      %p383 = por %p381, %p382
      %p384 = scmp.ne.s32.totalorder %s373, %s374
      %p385 = scmp.eq.s32.totalorder %s41, 0
      %p386 = por %p384, %p385
      %p387 = scmp.ne.s32.totalorder %s373, %s374
      %p388 = scmp.eq.s32.totalorder %s42, 3
      %p389 = por %p387, %p388
      %p391 = scmp.ne.s32.totalorder %s374, %s390
      %p392 = scmp.eq.s32.totalorder %s42, 0
      %p393 = por %p391, %p392
      %s394 = ssub.s32 %s43, %s55
      %p395 = scmp.eq.s32.totalorder %s394, 0
      %s397 = sadd.s32 %s396, 1
      %s398 = scalar_select %p395, %s396, %s397
      %p401 = pneg %p395
      %p402 = scmp.eq.s32.totalorder %s36, 3
      %p403 = por %p401, %p402
      %p404 = scmp.ne.s32.totalorder %s396, %s399
      %p405 = scmp.eq.s32.totalorder %s36, 0
      %p406 = por %p404, %p405
      %p407 = scmp.ne.s32.totalorder %s396, %s399
      %p408 = scmp.eq.s32.totalorder %s41, 3
      %p409 = por %p407, %p408
      %p410 = scmp.ne.s32.totalorder %s399, %s400
      %p411 = scmp.eq.s32.totalorder %s41, 0
      %p412 = por %p410, %p411
      %p413 = scmp.ne.s32.totalorder %s399, %s400
      %p414 = scmp.eq.s32.totalorder %s42, 3
      %p415 = por %p413, %p414
      %p417 = scmp.ne.s32.totalorder %s400, %s416
      %p418 = scmp.eq.s32.totalorder %s42, 0
      %p419 = por %p417, %p418
      %p420 = scmp.le.s32.totalorder 1, %s36
      %p421 = scmp.lt.s32.totalorder %s36, 5
      %p422 = pnand %p420, %p421
      %p423 = pneg %p422
      // Predicated region
      $region9: #{tpu_custom_call.1} parent=5 // pred_check
        _
      $region10: #{tpu_custom_call.1} parent=5 // pred_check_branch
        %425 = sbr.rel (%p422) target = $region12
      $region11: #{tpu_custom_call.1} parent=5 // pred_region
        %s426 = ssub.s32 %s36, 1
      $region12: #{tpu_custom_call.1} parent=5 // pred_fallthru
        _
      %p427 = scmp.lt.s32.totalorder %s36, 4
      // Predicated region
      $region13: #{tpu_custom_call.1} parent=5 // pred_check
        %p428 = pneg %p427
      $region14: #{tpu_custom_call.1} parent=5 // pred_check_branch
        %430 = sbr.rel (%p428) target = $region16
      $region15: #{tpu_custom_call.1} parent=5 // pred_region
        // Predicated region
        $region17: #{tpu_custom_call.1} parent=15 // pred_check
          %p431 = pneg %p68
        $region18: #{tpu_custom_call.1} parent=15 // pred_check_branch
          %433 = sbr.rel (%p431) target = $region20
        $region19: #{tpu_custom_call.1} parent=15 // pred_region
          %s434 = sand.u32 %s58, 1
          %s435 = scalar_lea.sflag [#allocation5], %s434
          %s436 = sand.u32 %s58, 1
          %s437 = smul.addr %s436, 8
          %s438 = scalar_lea.vmem [#allocation4], %s437
          %s440 = ssub.s32 128, 128
          %441 = vsyncadd %s435, %s440
          %s442 = smul.addr %s43, 128
          %s443 = scalar_lea.hbm %s1, %s442
          %s445 = sshll.u32 %s438, 4
          %s446 = int_to_ptr.vmem [resolvable:$true] %s445
          %448 = dma.hbm_to_vmem [thread:$0]  %s443, 128, %s446, %s435
        $region20: #{tpu_custom_call.1} parent=15 // pred_fallthru
          _
        // Predicated region
        $region21: #{tpu_custom_call.1} parent=15 // pred_check
          %p449 = pneg %p94
        $region22: #{tpu_custom_call.1} parent=15 // pred_check_branch
          %451 = sbr.rel (%p449) target = $region24
        $region23: #{tpu_custom_call.1} parent=15 // pred_region
          %p452 = scmp.lt.s32.totalorder %s44, 1
          %s453 = scalar_select %p452, %s44, 1
          %s454 = smul.addr %s453, 4
          %s455 = smul.addr %s454, 4
          %s456 = scalar_lea.vmem %s2, %s455
        $region24: #{tpu_custom_call.1} parent=15 // pred_fallthru
          _
        // Predicated region
        $region25: #{tpu_custom_call.1} parent=15 // pred_check
          %p457 = pneg %p120
        $region26: #{tpu_custom_call.1} parent=15 // pred_check_branch
          %459 = sbr.rel (%p457) target = $region28
        $region27: #{tpu_custom_call.1} parent=15 // pred_region
          %p460 = scmp.lt.s32.totalorder %s44, 1
          %s461 = scalar_select %p460, %s44, 1
          %s462 = scalar_lea.vmem %s3, %s461
        $region28: #{tpu_custom_call.1} parent=15 // pred_fallthru
          _
        // Predicated region
        $region29: #{tpu_custom_call.1} parent=15 // pred_check
          %p463 = pneg %p146
        $region30: #{tpu_custom_call.1} parent=15 // pred_check_branch
          %465 = sbr.rel (%p463) target = $region32
        $region31: #{tpu_custom_call.1} parent=15 // pred_region
          %p466 = scmp.lt.s32.totalorder %s44, 1
          %s467 = scalar_select %p466, %s44, 1
          %s468 = smul.addr %s467, 4
          %s469 = smul.addr %s468, 4
          %s470 = scalar_lea.vmem %s4, %s469
        $region32: #{tpu_custom_call.1} parent=15 // pred_fallthru
          _
        // Predicated region
        $region33: #{tpu_custom_call.1} parent=15 // pred_check
          %p471 = pneg %p172
        $region34: #{tpu_custom_call.1} parent=15 // pred_check_branch
          %473 = sbr.rel (%p471) target = $region36
        $region35: #{tpu_custom_call.1} parent=15 // pred_region
          %p474 = scmp.lt.s32.totalorder %s44, 1
          %s475 = scalar_select %p474, %s44, 1
          %s476 = scalar_lea.vmem %s5, %s475
        $region36: #{tpu_custom_call.1} parent=15 // pred_fallthru
          _
        // Predicated region
        $region37: #{tpu_custom_call.1} parent=15 // pred_check
          %p477 = pneg %p198
        $region38: #{tpu_custom_call.1} parent=15 // pred_check_branch
          %479 = sbr.rel (%p477) target = $region40
        $region39: #{tpu_custom_call.1} parent=15 // pred_region
          %s480 = sand.u32 %s36, 1
          %s481 = scalar_lea.sflag [#allocation8], %s480
          %s482 = sand.u32 %s188, 1
          %s483 = scalar_lea.vmem [#allocation7], %s482
          %s485 = ssub.s32 16, 16
          %486 = vsyncadd %s481, %s485
          %s487 = smul.addr %s44, 16
          %s488 = scalar_lea.hbm %s6, %s487
          %s490 = sshll.u32 %s483, 4
          %s491 = int_to_ptr.vmem [resolvable:$true] %s490
          %493 = dma.hbm_to_vmem [thread:$0]  %s488, 16, %s491, %s481
        $region40: #{tpu_custom_call.1} parent=15 // pred_fallthru
          _
        // Predicated region
        $region41: #{tpu_custom_call.1} parent=15 // pred_check
          %p494 = pneg %p224
        $region42: #{tpu_custom_call.1} parent=15 // pred_check_branch
          %496 = sbr.rel (%p494) target = $region44
        $region43: #{tpu_custom_call.1} parent=15 // pred_region
          %s497 = sand.u32 %s36, 1
          %s498 = scalar_lea.sflag [#allocation8], %s497
          %s499 = sand.u32 %s214, 1
          %s500 = scalar_lea.vmem [#allocation9], %s499
          %s502 = ssub.s32 16, 16
          %503 = vsyncadd %s498, %s502
          %s504 = smul.addr %s44, 16
          %s505 = scalar_lea.hbm %s7, %s504
          %s507 = sshll.u32 %s500, 4
          %s508 = int_to_ptr.vmem [resolvable:$true] %s507
          %510 = dma.hbm_to_vmem [thread:$0]  %s505, 16, %s508, %s498
        $region44: #{tpu_custom_call.1} parent=15 // pred_fallthru
          _
        // Predicated region
        $region45: #{tpu_custom_call.1} parent=15 // pred_check
          %p511 = pneg %p250
        $region46: #{tpu_custom_call.1} parent=15 // pred_check_branch
          %513 = sbr.rel (%p511) target = $region48
        $region47: #{tpu_custom_call.1} parent=15 // pred_region
          %p514 = scmp.lt.s32.totalorder %s44, 1
          %s515 = scalar_select %p514, %s44, 1
          %s516 = smul.addr %s515, 4
          %s517 = smul.addr %s516, 4
          %s518 = scalar_lea.vmem %s8, %s517
        $region48: #{tpu_custom_call.1} parent=15 // pred_fallthru
          _
        // Predicated region
        $region49: #{tpu_custom_call.1} parent=15 // pred_check
          %p519 = pneg %p276
        $region50: #{tpu_custom_call.1} parent=15 // pred_check_branch
          %521 = sbr.rel (%p519) target = $region52
        $region51: #{tpu_custom_call.1} parent=15 // pred_region
          %s522 = sand.u32 %s266, 1
          %s523 = scalar_lea.sflag [#allocation11], %s522
          %s524 = sand.u32 %s266, 1
          %s525 = scalar_lea.vmem [#allocation10], %s524
          %s527 = ssub.s32 16, 16
          %528 = vsyncadd %s523, %s527
          %s529 = smul.addr %s44, 16
          %s530 = scalar_lea.hbm %s9, %s529
          %s532 = sshll.u32 %s525, 4
          %s533 = int_to_ptr.vmem [resolvable:$true] %s532
          %535 = dma.hbm_to_vmem [thread:$0]  %s530, 16, %s533, %s523
        $region52: #{tpu_custom_call.1} parent=15 // pred_fallthru
          _
        // Predicated region
        $region53: #{tpu_custom_call.1} parent=15 // pred_check
          %p536 = pneg %p302
        $region54: #{tpu_custom_call.1} parent=15 // pred_check_branch
          %538 = sbr.rel (%p536) target = $region56
        $region55: #{tpu_custom_call.1} parent=15 // pred_region
          %p539 = scmp.lt.s32.totalorder %s44, 1
          %s540 = scalar_select %p539, %s44, 1
          %s541 = smul.addr %s540, 8
          %s542 = smul.addr %s541, 4
          %s543 = scalar_lea.vmem %s10, %s542
        $region56: #{tpu_custom_call.1} parent=15 // pred_fallthru
          _
        // Predicated region
        $region57: #{tpu_custom_call.1} parent=15 // pred_check
          %p544 = pneg %p328
        $region58: #{tpu_custom_call.1} parent=15 // pred_check_branch
          %546 = sbr.rel (%p544) target = $region60
        $region59: #{tpu_custom_call.1} parent=15 // pred_region
          %p547 = scmp.lt.s32.totalorder %s44, 1
          %s548 = scalar_select %p547, %s44, 1
          %s549 = scalar_lea.vmem %s11, %s548
        $region60: #{tpu_custom_call.1} parent=15 // pred_fallthru
          _
        // Predicated region
        $region61: #{tpu_custom_call.1} parent=15 // pred_check
          %p550 = pneg %p354
        $region62: #{tpu_custom_call.1} parent=15 // pred_check_branch
          %552 = sbr.rel (%p550) target = $region64
        $region63: #{tpu_custom_call.1} parent=15 // pred_region
          %p553 = scmp.lt.s32.totalorder %s44, 1
          %s554 = scalar_select %p553, %s44, 1
          %s555 = scalar_lea.vmem %s12, %s554
        $region64: #{tpu_custom_call.1} parent=15 // pred_fallthru
          _
        // Predicated region
        $region65: #{tpu_custom_call.1} parent=15 // pred_check
          %p556 = pneg %p380
        $region66: #{tpu_custom_call.1} parent=15 // pred_check_branch
          %558 = sbr.rel (%p556) target = $region68
        $region67: #{tpu_custom_call.1} parent=15 // pred_region
          %p559 = scmp.lt.s32.totalorder %s44, 1
          %s560 = scalar_select %p559, %s44, 1
          %s561 = scalar_lea.vmem %s13, %s560
        $region68: #{tpu_custom_call.1} parent=15 // pred_fallthru
          _
      $region16: #{tpu_custom_call.1} parent=5 // pred_fallthru
        _
      %p562 = scmp.le.s32.totalorder 1, %s36
      %p563 = scmp.lt.s32.totalorder %s36, 5
      %p564 = pnand %p562, %p563
      %p565 = pneg %p564
      // Predicated region
      $region69: #{tpu_custom_call.1} parent=5 // pred_check
        _
      $region70: #{tpu_custom_call.1} parent=5 // pred_check_branch
        %567 = sbr.rel (%p564) target = $region72
      $region71: #{tpu_custom_call.1} parent=5 // pred_region
        %s568 = ssub.s32 %s36, 1
        %s569 = sand.u32 %s61, 1
        %s570 = scalar_lea.sflag [#allocation5], %s569
        %s571 = sand.u32 %s61, 1
        %s572 = smul.addr %s571, 8
        %s573 = scalar_lea.vmem [#allocation4], %s572
        // Predicated region
        $region73: #{tpu_custom_call.1} parent=71 // pred_check
          %p574 = pneg %p74
        $region74: #{tpu_custom_call.1} parent=71 // pred_check_branch
          %576 = sbr.rel (%p574) target = $region76
        $region75: #{tpu_custom_call.1} parent=71 // pred_region
          %577 = dma.done %s570, 128
        $region76: #{tpu_custom_call.1} parent=71 // pred_fallthru
          _
        %s578 = sand.u32 %s41, 1
        %s579 = scalar_lea.sflag [#allocation8], %s578
        %s580 = sand.u32 %s191, 1
        %s581 = scalar_lea.vmem [#allocation7], %s580
        // Predicated region
        $region77: #{tpu_custom_call.1} parent=71 // pred_check
          %p582 = pneg %p204
        $region78: #{tpu_custom_call.1} parent=71 // pred_check_branch
          %584 = sbr.rel (%p582) target = $region80
        $region79: #{tpu_custom_call.1} parent=71 // pred_region
          %585 = dma.done %s579, 16
        $region80: #{tpu_custom_call.1} parent=71 // pred_fallthru
          _
        %s586 = sand.u32 %s41, 1
        %s587 = scalar_lea.sflag [#allocation8], %s586
        %s588 = sand.u32 %s217, 1
        %s589 = scalar_lea.vmem [#allocation9], %s588
        // Predicated region
        $region81: #{tpu_custom_call.1} parent=71 // pred_check
          %p590 = pneg %p230
        $region82: #{tpu_custom_call.1} parent=71 // pred_check_branch
          %592 = sbr.rel (%p590) target = $region84
        $region83: #{tpu_custom_call.1} parent=71 // pred_region
          %593 = dma.done %s587, 16
        $region84: #{tpu_custom_call.1} parent=71 // pred_fallthru
          _
        %s594 = sand.u32 %s269, 1
        %s595 = scalar_lea.sflag [#allocation11], %s594
        %s596 = sand.u32 %s269, 1
        %s597 = scalar_lea.vmem [#allocation10], %s596
        // Predicated region
        $region85: #{tpu_custom_call.1} parent=71 // pred_check
          %p598 = pneg %p282
        $region86: #{tpu_custom_call.1} parent=71 // pred_check_branch
          %600 = sbr.rel (%p598) target = $region88
        $region87: #{tpu_custom_call.1} parent=71 // pred_region
          %601 = dma.done %s595, 16
        $region88: #{tpu_custom_call.1} parent=71 // pred_fallthru
          _
        %s602 = sand.u32 %s61, 1
        %s603 = scalar_lea.sflag [#allocation5], %s602
        %s604 = sand.u32 %s61, 1
        %s605 = smul.addr %s604, 8
        %s606 = scalar_lea.vmem [#allocation4], %s605
        %p607 = pneg %p74
        %p608 = pneg %p71
        %p609 = scmp.lt.s32.totalorder %s46, 1
        %s610 = scalar_select %p609, %s46, 1
        %s611 = smul.addr %s610, 4
        %s612 = smul.addr %s611, 4
        %s613 = scalar_lea.vmem %s2, %s612
        %p614 = pneg %p100
        %p615 = pneg %p97
        %p616 = scmp.lt.s32.totalorder %s46, 1
        %s617 = scalar_select %p616, %s46, 1
        %s618 = scalar_lea.vmem %s3, %s617
        %p619 = pneg %p126
        %p620 = pneg %p123
        %p621 = scmp.lt.s32.totalorder %s46, 1
        %s622 = scalar_select %p621, %s46, 1
        %s623 = smul.addr %s622, 4
        %s624 = smul.addr %s623, 4
        %s625 = scalar_lea.vmem %s4, %s624
        %p626 = pneg %p152
        %p627 = pneg %p149
        %p628 = scmp.lt.s32.totalorder %s46, 1
        %s629 = scalar_select %p628, %s46, 1
        %s630 = scalar_lea.vmem %s5, %s629
        %p631 = pneg %p178
        %p632 = pneg %p175
        %s633 = sand.u32 %s41, 1
        %s634 = scalar_lea.sflag [#allocation8], %s633
        %s635 = sand.u32 %s191, 1
        %s636 = scalar_lea.vmem [#allocation7], %s635
        %p637 = pneg %p204
        %p638 = pneg %p201
        %s639 = sand.u32 %s41, 1
        %s640 = scalar_lea.sflag [#allocation8], %s639
        %s641 = sand.u32 %s217, 1
        %s642 = scalar_lea.vmem [#allocation9], %s641
        %p643 = pneg %p230
        %p644 = pneg %p227
        %p645 = scmp.lt.s32.totalorder %s46, 1
        %s646 = scalar_select %p645, %s46, 1
        %s647 = smul.addr %s646, 4
        %s648 = smul.addr %s647, 4
        %s649 = scalar_lea.vmem %s8, %s648
        %p650 = pneg %p256
        %p651 = pneg %p253
        %s652 = sand.u32 %s269, 1
        %s653 = scalar_lea.sflag [#allocation11], %s652
        %s654 = sand.u32 %s269, 1
        %s655 = scalar_lea.vmem [#allocation10], %s654
        %p656 = pneg %p282
        %p657 = pneg %p279
        %p658 = scmp.lt.s32.totalorder %s46, 1
        %s659 = scalar_select %p658, %s46, 1
        %s660 = smul.addr %s659, 8
        %s661 = smul.addr %s660, 4
        %s662 = scalar_lea.vmem %s10, %s661
        %p663 = pneg %p308
        %p664 = pneg %p305
        %p665 = scmp.lt.s32.totalorder %s46, 1
        %s666 = scalar_select %p665, %s46, 1
        %s667 = scalar_lea.vmem %s11, %s666
        %p668 = pneg %p334
        %p669 = pneg %p331
        %p670 = scmp.lt.s32.totalorder %s46, 1
        %s671 = scalar_select %p670, %s46, 1
        %s672 = scalar_lea.vmem %s12, %s671
        %p673 = pneg %p360
        %p674 = pneg %p357
        %p675 = scmp.lt.s32.totalorder %s46, 1
        %s676 = scalar_select %p675, %s46, 1
        %s677 = scalar_lea.vmem %s13, %s676
        %p678 = pneg %p386
        %p679 = pneg %p383
        %p680 = pneg %p412
        %p681 = pneg %p409
        %s682 = sand.u32 %s399, 1
        %s683 = scalar_lea.sflag [#allocation6], %s682
        %s684 = sand.u32 %s399, 1
        %s685 = smul.addr %s684, 8
        %s686 = scalar_lea.vmem [#allocation12], %s685
        %p687 = scmp.lt.s32.totalorder %s46, 1
        %s688 = scalar_select %p687, %s46, 1
        %s689 = smul.addr %s688, 4
        %s690 = smul.addr %s689, 4
        %s691 = scalar_lea.vmem %s2, %s690
        %p692 = scmp.lt.s32.totalorder %s46, 1
        %s693 = scalar_select %p692, %s46, 1
        %s694 = scalar_lea.vmem %s3, %s693
        %p695 = scmp.lt.s32.totalorder %s46, 1
        %s696 = scalar_select %p695, %s46, 1
        %s697 = smul.addr %s696, 4
        %s698 = smul.addr %s697, 4
        %s699 = scalar_lea.vmem %s4, %s698
        %p700 = scmp.lt.s32.totalorder %s46, 1
        %s701 = scalar_select %p700, %s46, 1
        %s702 = scalar_lea.vmem %s5, %s701
        %p703 = scmp.lt.s32.totalorder %s46, 1
        %s704 = scalar_select %p703, %s46, 1
        %s705 = smul.addr %s704, 4
        %s706 = smul.addr %s705, 4
        %s707 = scalar_lea.vmem %s8, %s706
        %p708 = scmp.lt.s32.totalorder %s46, 1
        %s709 = scalar_select %p708, %s46, 1
        %s710 = smul.addr %s709, 8
        %s711 = smul.addr %s710, 4
        %s712 = scalar_lea.vmem %s10, %s711
        %p713 = scmp.lt.s32.totalorder %s46, 1
        %s714 = scalar_select %p713, %s46, 1
        %s715 = scalar_lea.vmem %s11, %s714
        %p716 = scmp.lt.s32.totalorder %s46, 1
        %s717 = scalar_select %p716, %s46, 1
        %s718 = scalar_lea.vmem %s12, %s717
        %p719 = scmp.lt.s32.totalorder %s46, 1
        %s720 = scalar_select %p719, %s46, 1
        %s721 = scalar_lea.vmem %s13, %s720
        %p723 = scmp.eq.s32.totalorder %s46, 0
        // Predicated region
        $region89: #{tpu_custom_call.1} parent=71 // pred_check
          %p724 = pneg %p723
        $region90: #{tpu_custom_call.1} parent=71 // pred_check_branch
          %726 = sbr.rel (%p724) target = $region92
        $region91: #{tpu_custom_call.1} parent=71 // pred_region
          %v727 = vld [vmem:[%s573] sm:$0xff]
          %vm728 = vcmask 261120
          %729 = vst.msk [vmem:[%s686] sm:$0xff] %vm728, %v727
        $region92: #{tpu_custom_call.1} parent=71 // pred_fallthru
          _
        %v730 = vld [vmem:[%s686] sm:$0xff]
        %v731 = vpack.c.bf16 %v730, %v730
        %v732 = vld [vmem:[%s691] sm:$0xf]
        %v733 = vld [vmem:[%s691 + $0x4] sm:$0xf]
        %v734 = vld [vmem:[%s691 + $0x8] sm:$0xf]
        %v735 = vld [vmem:[%s691 + $0xc] sm:$0xf]
        %v736 = vld [vmem:[%s694] sm:$0x1]
        %v738 = vlaneseq
        %v739 = vshrl.u32 %v738, 7
        %v740 = vsub.s32 0, %v739
        %v741 = vrot.slane %v736, %v740
        %v747 = vunpack.c.l.b16 %v732
        %v748 = vunpack.c.l.b16 %v733
        %v749 = vunpack.c.l.b16 %v734
        %v750 = vunpack.c.l.b16 %v735
        %v751 = vpack.c.b16 %v748, %v747
        %v752 = vpack.c.b16 %v750, %v749
        %vm755 = vcmask 261120
        %v757 = vsel %vm755, %v731, 0
        %759 = vmatprep.subr.bf16.mxu0 0
        %760 = vmatpush1.bf16.msra.mxu0 %v751
        %761 = vmatprep.subr.bf16.mxu0 0
        %762 = vmatpush1.bf16.msra.mxu0 %v752
        %763 = vmatprep.subr.bf16.mxu0 0
        %764 = vmatpush1.bf16.msra.mxu0 0
        %765 = vmatprep.subr.bf16.mxu0 0
        %766 = vmatpush1.bf16.msra.mxu0 0
        %767 = vmatprep.subr.bf16.mxu0 0
        %768 = vmatpush1.bf16.msra.mxu0 0
        %769 = vmatprep.subr.bf16.mxu0 0
        %770 = vmatpush1.bf16.msra.mxu0 0
        %771 = vmatprep.subr.bf16.mxu0 0
        %772 = vmatpush1.bf16.msra.mxu0 0
        %773 = vmatprep.subr.bf16.mxu0 0
        %774 = vmatpush1.bf16.msra.mxu0 0
        %775 = vmatprep.subr.bf16.mxu0 0
        %776 = vmatpush1.bf16.msra.mxu0 0
        %777 = vmatprep.subr.bf16.mxu0 0
        %778 = vmatpush1.bf16.msra.mxu0 0
        %779 = vmatprep.subr.bf16.mxu0 0
        %780 = vmatpush1.bf16.msra.mxu0 0
        %781 = vmatprep.subr.bf16.mxu0 0
        %782 = vmatpush1.bf16.msra.mxu0 0
        %783 = vmatprep.subr.bf16.mxu0 0
        %784 = vmatpush1.bf16.msra.mxu0 0
        %785 = vmatprep.subr.bf16.mxu0 0
        %786 = vmatpush1.bf16.msra.mxu0 0
        %787 = vmatprep.subr.bf16.mxu0 0
        %788 = vmatpush1.bf16.msra.mxu0 0
        %789 = vmatprep.subr.bf16.mxu0 0
        %790 = vmatpush1.bf16.msra.mxu0 0
        %791 = vmatprep.mubr.bf16.mxu0 0
        %792 = vmatmul.mubr.bf16.gmra.mrb[0].mxu0 %v757
        %v793 = vpop.f32.mrb[0].mxu0
        %v794 = vadd.f32 %v741, %v793
        %v795 = vpop.f32.mrb[0].mxu0
        %v796 = vpop.f32.mrb[0].mxu0
        %v797 = vpop.f32.mrb[0].mxu0
        %798 = vdwg.mxu0
        %800 = vrot.lane.b32.xlu0 %v794, 112
        %v801 = vpop.permute.xlu0 %800
        %v803 = vcombine.high %v794, 0.0
        %v805 = vunpack.c.l.s4 1983009808
        %v806 = vunpack.c.0.s8 %v805
        %v807 = vlaneseq
        %v808 = vshrl.u32 %v807, 7
        %v809 = vsub.s32 %v806, %v808
        %v810 = vrot.slane %v794, %v809
        %v812 = vunpack.c.l.s4 1983009808
        %v813 = vunpack.c.0.s8 %v812
        %v814 = vlaneseq
        %v815 = vshrl.u32 %v814, 7
        %v816 = vsub.s32 %v813, %v815
        %v817 = vrot.slane %v803, %v816
        %v818 = vcombine.high %v801, 0.0
        %v820 = vunpack.c.l.s4 1983009808
        %v821 = vunpack.c.0.s8 %v820
        %v822 = vlaneseq
        %v823 = vshrl.u32 %v822, 7
        %v824 = vsub.s32 %v821, %v823
        %v825 = vrot.slane %v801, %v824
        %v827 = vunpack.c.l.s4 1983009808
        %v828 = vunpack.c.0.s8 %v827
        %v829 = vlaneseq
        %v830 = vshrl.u32 %v829, 7
        %v831 = vsub.s32 %v828, %v830
        %v832 = vrot.slane %v818, %v831
        %v833 = vcombine.low %v810, %v825
        %v834 = vcombine.high %v810, %v825
        %v836 = vunpack.c.l.s4 1934713408
        %v837 = vunpack.c.0.s8 %v836
        %v838 = vlaneseq
        %v839 = vshrl.u32 %v838, 7
        %v840 = vsub.s32 %v837, %v839
        %v841 = vrot.slane %v833, %v840
        %v843 = vunpack.c.l.s4 1934713408
        %v844 = vunpack.c.0.s8 %v843
        %v845 = vlaneseq
        %v846 = vshrl.u32 %v845, 7
        %v847 = vsub.s32 %v844, %v846
        %v848 = vrot.slane %v834, %v847
        %v849 = vcombine.low %v817, %v832
        %v850 = vcombine.high %v817, %v832
        %v852 = vunpack.c.l.s4 1934713408
        %v853 = vunpack.c.0.s8 %v852
        %v854 = vlaneseq
        %v855 = vshrl.u32 %v854, 7
        %v856 = vsub.s32 %v853, %v855
        %v857 = vrot.slane %v849, %v856
        %v859 = vunpack.c.l.s4 1934713408
        %v860 = vunpack.c.0.s8 %v859
        %v861 = vlaneseq
        %v862 = vshrl.u32 %v861, 7
        %v863 = vsub.s32 %v860, %v862
        %v864 = vrot.slane %v850, %v863
        %v865 = vcombine.high %v841, 0.0
        %v866 = vcombine.high %v848, 0.0
        %v867 = vcombine.high %v857, 0.0
        %v868 = vcombine.high %v864, 0.0
        %v869 = vcombine.low %v841, %v848
        %v871 = vunpack.c.l.s4 1983009808
        %v872 = vunpack.c.0.s8 %v871
        %v873 = vlaneseq
        %v874 = vshrl.u32 %v873, 7
        %v875 = vsub.s32 %v872, %v874
        %v876 = vrot.slane %v869, %v875
        %v877 = vcombine.low %v865, %v866
        %v879 = vunpack.c.l.s4 1983009808
        %v880 = vunpack.c.0.s8 %v879
        %v881 = vlaneseq
        %v882 = vshrl.u32 %v881, 7
        %v883 = vsub.s32 %v880, %v882
        %v884 = vrot.slane %v877, %v883
        %v885 = vcombine.low %v857, %v864
        %v887 = vunpack.c.l.s4 1983009808
        %v888 = vunpack.c.0.s8 %v887
        %v889 = vlaneseq
        %v890 = vshrl.u32 %v889, 7
        %v891 = vsub.s32 %v888, %v890
        %v892 = vrot.slane %v885, %v891
        %v893 = vcombine.low %v867, %v868
        %v895 = vunpack.c.l.s4 1983009808
        %v896 = vunpack.c.0.s8 %v895
        %v897 = vlaneseq
        %v898 = vshrl.u32 %v897, 7
        %v899 = vsub.s32 %v896, %v898
        %v900 = vrot.slane %v893, %v899
        %v901 = vcombine.low %v876, %v884
        %v903 = vunpack.c.l.s4 1934713408
        %v904 = vunpack.c.0.s8 %v903
        %v905 = vlaneseq
        %v906 = vshrl.u32 %v905, 7
        %v907 = vsub.s32 %v904, %v906
        %v908 = vrot.slane %v901, %v907
        %v909 = vcombine.low %v892, %v900
        %v911 = vunpack.c.l.s4 1934713408
        %v912 = vunpack.c.0.s8 %v911
        %v913 = vlaneseq
        %v914 = vshrl.u32 %v913, 7
        %v915 = vsub.s32 %v912, %v914
        %v916 = vrot.slane %v909, %v915
        %v917 = vcombine.low %v908, %v916
        %v918 = vcombine.high %v908, %v916
        %v919 = vpack.c.bf16 %v917, %v917
        %v920 = vpack.c.bf16 %v918, %v918
        %921 = vrot.lane.b32.xlu0 %v794, 96
        %v922 = vpop.permute.xlu0 %921
        %923 = vrot.lane.b32.xlu0 %v801, 96
        %v924 = vpop.permute.xlu0 %923
        %v927 = vcombine.high %v922, 0.0
        %v929 = vunpack.c.l.s4 1983009808
        %v930 = vunpack.c.0.s8 %v929
        %v931 = vlaneseq
        %v932 = vshrl.u32 %v931, 7
        %v933 = vsub.s32 %v930, %v932
        %v934 = vrot.slane %v922, %v933
        %v936 = vunpack.c.l.s4 1983009808
        %v937 = vunpack.c.0.s8 %v936
        %v938 = vlaneseq
        %v939 = vshrl.u32 %v938, 7
        %v940 = vsub.s32 %v937, %v939
        %v941 = vrot.slane %v927, %v940
        %v942 = vcombine.high %v924, 0.0
        %v944 = vunpack.c.l.s4 1983009808
        %v945 = vunpack.c.0.s8 %v944
        %v946 = vlaneseq
        %v947 = vshrl.u32 %v946, 7
        %v948 = vsub.s32 %v945, %v947
        %v949 = vrot.slane %v924, %v948
        %v951 = vunpack.c.l.s4 1983009808
        %v952 = vunpack.c.0.s8 %v951
        %v953 = vlaneseq
        %v954 = vshrl.u32 %v953, 7
        %v955 = vsub.s32 %v952, %v954
        %v956 = vrot.slane %v942, %v955
        %v957 = vcombine.low %v934, %v949
        %v958 = vcombine.high %v934, %v949
        %v960 = vunpack.c.l.s4 1934713408
        %v961 = vunpack.c.0.s8 %v960
        %v962 = vlaneseq
        %v963 = vshrl.u32 %v962, 7
        %v964 = vsub.s32 %v961, %v963
        %v965 = vrot.slane %v957, %v964
        %v967 = vunpack.c.l.s4 1934713408
        %v968 = vunpack.c.0.s8 %v967
        %v969 = vlaneseq
        %v970 = vshrl.u32 %v969, 7
        %v971 = vsub.s32 %v968, %v970
        %v972 = vrot.slane %v958, %v971
        %v973 = vcombine.low %v941, %v956
        %v974 = vcombine.high %v941, %v956
        %v976 = vunpack.c.l.s4 1934713408
        %v977 = vunpack.c.0.s8 %v976
        %v978 = vlaneseq
        %v979 = vshrl.u32 %v978, 7
        %v980 = vsub.s32 %v977, %v979
        %v981 = vrot.slane %v973, %v980
        %v983 = vunpack.c.l.s4 1934713408
        %v984 = vunpack.c.0.s8 %v983
        %v985 = vlaneseq
        %v986 = vshrl.u32 %v985, 7
        %v987 = vsub.s32 %v984, %v986
        %v988 = vrot.slane %v974, %v987
        %v989 = vcombine.high %v965, 0.0
        %v990 = vcombine.high %v972, 0.0
        %v991 = vcombine.high %v981, 0.0
        %v992 = vcombine.high %v988, 0.0
        %v993 = vcombine.low %v965, %v972
        %v995 = vunpack.c.l.s4 1983009808
        %v996 = vunpack.c.0.s8 %v995
        %v997 = vlaneseq
        %v998 = vshrl.u32 %v997, 7
        %v999 = vsub.s32 %v996, %v998
        %v1000 = vrot.slane %v993, %v999
        %v1001 = vcombine.low %v989, %v990
        %v1003 = vunpack.c.l.s4 1983009808
        %v1004 = vunpack.c.0.s8 %v1003
        %v1005 = vlaneseq
        %v1006 = vshrl.u32 %v1005, 7
        %v1007 = vsub.s32 %v1004, %v1006
        %v1008 = vrot.slane %v1001, %v1007
        %v1009 = vcombine.low %v981, %v988
        %v1011 = vunpack.c.l.s4 1983009808
        %v1012 = vunpack.c.0.s8 %v1011
        %v1013 = vlaneseq
        %v1014 = vshrl.u32 %v1013, 7
        %v1015 = vsub.s32 %v1012, %v1014
        %v1016 = vrot.slane %v1009, %v1015
        %v1017 = vcombine.low %v991, %v992
        %v1019 = vunpack.c.l.s4 1983009808
        %v1020 = vunpack.c.0.s8 %v1019
        %v1021 = vlaneseq
        %v1022 = vshrl.u32 %v1021, 7
        %v1023 = vsub.s32 %v1020, %v1022
        %v1024 = vrot.slane %v1017, %v1023
        %v1025 = vcombine.low %v1000, %v1008
        %v1027 = vunpack.c.l.s4 1934713408
        %v1028 = vunpack.c.0.s8 %v1027
        %v1029 = vlaneseq
        %v1030 = vshrl.u32 %v1029, 7
        %v1031 = vsub.s32 %v1028, %v1030
        %v1032 = vrot.slane %v1025, %v1031
        %v1033 = vcombine.low %v1016, %v1024
        %v1035 = vunpack.c.l.s4 1934713408
        %v1036 = vunpack.c.0.s8 %v1035
        %v1037 = vlaneseq
        %v1038 = vshrl.u32 %v1037, 7
        %v1039 = vsub.s32 %v1036, %v1038
        %v1040 = vrot.slane %v1033, %v1039
        %v1041 = vcombine.low %v1032, %v1040
        %v1042 = vcombine.high %v1032, %v1040
        %v1043 = vpack.c.bf16 %v1041, %v1041
        %v1044 = vpack.c.bf16 %v1042, %v1042
        %1045 = vrot.lane.b32.xlu0 %v794, 64
        %v1046 = vpop.permute.xlu0 %1045
        %1047 = vrot.lane.b32.xlu0 %v801, 64
        %v1048 = vpop.permute.xlu0 %1047
        %v1051 = vcombine.high %v1046, 0.0
        %v1053 = vunpack.c.l.s4 1983009808
        %v1054 = vunpack.c.0.s8 %v1053
        %v1055 = vlaneseq
        %v1056 = vshrl.u32 %v1055, 7
        %v1057 = vsub.s32 %v1054, %v1056
        %v1058 = vrot.slane %v1046, %v1057
        %v1060 = vunpack.c.l.s4 1983009808
        %v1061 = vunpack.c.0.s8 %v1060
        %v1062 = vlaneseq
        %v1063 = vshrl.u32 %v1062, 7
        %v1064 = vsub.s32 %v1061, %v1063
        %v1065 = vrot.slane %v1051, %v1064
        %v1066 = vcombine.high %v1048, 0.0
        %v1068 = vunpack.c.l.s4 1983009808
        %v1069 = vunpack.c.0.s8 %v1068
        %v1070 = vlaneseq
        %v1071 = vshrl.u32 %v1070, 7
        %v1072 = vsub.s32 %v1069, %v1071
        %v1073 = vrot.slane %v1048, %v1072
        %v1075 = vunpack.c.l.s4 1983009808
        %v1076 = vunpack.c.0.s8 %v1075
        %v1077 = vlaneseq
        %v1078 = vshrl.u32 %v1077, 7
        %v1079 = vsub.s32 %v1076, %v1078
        %v1080 = vrot.slane %v1066, %v1079
        %v1081 = vcombine.low %v1058, %v1073
        %v1082 = vcombine.high %v1058, %v1073
        %v1084 = vunpack.c.l.s4 1934713408
        %v1085 = vunpack.c.0.s8 %v1084
        %v1086 = vlaneseq
        %v1087 = vshrl.u32 %v1086, 7
        %v1088 = vsub.s32 %v1085, %v1087
        %v1089 = vrot.slane %v1081, %v1088
        %v1091 = vunpack.c.l.s4 1934713408
        %v1092 = vunpack.c.0.s8 %v1091
        %v1093 = vlaneseq
        %v1094 = vshrl.u32 %v1093, 7
        %v1095 = vsub.s32 %v1092, %v1094
        %v1096 = vrot.slane %v1082, %v1095
        %v1097 = vcombine.low %v1065, %v1080
        %v1098 = vcombine.high %v1065, %v1080
        %v1100 = vunpack.c.l.s4 1934713408
        %v1101 = vunpack.c.0.s8 %v1100
        %v1102 = vlaneseq
        %v1103 = vshrl.u32 %v1102, 7
        %v1104 = vsub.s32 %v1101, %v1103
        %v1105 = vrot.slane %v1097, %v1104
        %v1107 = vunpack.c.l.s4 1934713408
        %v1108 = vunpack.c.0.s8 %v1107
        %v1109 = vlaneseq
        %v1110 = vshrl.u32 %v1109, 7
        %v1111 = vsub.s32 %v1108, %v1110
        %v1112 = vrot.slane %v1098, %v1111
        %v1113 = vcombine.high %v1089, 0.0
        %v1114 = vcombine.high %v1096, 0.0
        %v1115 = vcombine.high %v1105, 0.0
        %v1116 = vcombine.high %v1112, 0.0
        %v1117 = vcombine.low %v1089, %v1096
        %v1119 = vunpack.c.l.s4 1983009808
        %v1120 = vunpack.c.0.s8 %v1119
        %v1121 = vlaneseq
        %v1122 = vshrl.u32 %v1121, 7
        %v1123 = vsub.s32 %v1120, %v1122
        %v1124 = vrot.slane %v1117, %v1123
        %v1125 = vcombine.low %v1113, %v1114
        %v1127 = vunpack.c.l.s4 1983009808
        %v1128 = vunpack.c.0.s8 %v1127
        %v1129 = vlaneseq
        %v1130 = vshrl.u32 %v1129, 7
        %v1131 = vsub.s32 %v1128, %v1130
        %v1132 = vrot.slane %v1125, %v1131
        %v1133 = vcombine.low %v1105, %v1112
        %v1135 = vunpack.c.l.s4 1983009808
        %v1136 = vunpack.c.0.s8 %v1135
        %v1137 = vlaneseq
        %v1138 = vshrl.u32 %v1137, 7
        %v1139 = vsub.s32 %v1136, %v1138
        %v1140 = vrot.slane %v1133, %v1139
        %v1141 = vcombine.low %v1115, %v1116
        %v1143 = vunpack.c.l.s4 1983009808
        %v1144 = vunpack.c.0.s8 %v1143
        %v1145 = vlaneseq
        %v1146 = vshrl.u32 %v1145, 7
        %v1147 = vsub.s32 %v1144, %v1146
        %v1148 = vrot.slane %v1141, %v1147
        %v1149 = vcombine.low %v1124, %v1132
        %v1151 = vunpack.c.l.s4 1934713408
        %v1152 = vunpack.c.0.s8 %v1151
        %v1153 = vlaneseq
        %v1154 = vshrl.u32 %v1153, 7
        %v1155 = vsub.s32 %v1152, %v1154
        %v1156 = vrot.slane %v1149, %v1155
        %v1157 = vcombine.low %v1140, %v1148
        %v1159 = vunpack.c.l.s4 1934713408
        %v1160 = vunpack.c.0.s8 %v1159
        %v1161 = vlaneseq
        %v1162 = vshrl.u32 %v1161, 7
        %v1163 = vsub.s32 %v1160, %v1162
        %v1164 = vrot.slane %v1157, %v1163
        %v1165 = vcombine.low %v1156, %v1164
        %v1166 = vcombine.high %v1156, %v1164
        %v1167 = vpack.c.bf16 %v1165, %v1165
        %v1168 = vpack.c.bf16 %v1166, %v1166
        %vm1169 = vcmask 130048
        %v1171 = vsel %vm1169, %v919, 0
        %v1174 = vsel %vm1169, %v1043, 0
        %1176 = vmatprep.subr.bf16.mxu0 0
        %1177 = vmatpush1.bf16.xpose.msra.mxu0 %v1174
        %1178 = vmatprep.subr.bf16.mxu0 0
        %1179 = vmatpush1.bf16.xpose.msra.mxu0 0
        %1180 = vmatprep.subr.bf16.mxu0 0
        %1181 = vmatpush1.bf16.xpose.msra.mxu0 0
        %1182 = vmatprep.subr.bf16.mxu0 0
        %1183 = vmatpush1.bf16.xpose.msra.mxu0 0
        %1184 = vmatprep.subr.bf16.mxu0 0
        %1185 = vmatpush1.bf16.xpose.msra.mxu0 0
        %1186 = vmatprep.subr.bf16.mxu0 0
        %1187 = vmatpush1.bf16.xpose.msra.mxu0 0
        %1188 = vmatprep.subr.bf16.mxu0 0
        %1189 = vmatpush1.bf16.xpose.msra.mxu0 0
        %1190 = vmatprep.subr.bf16.mxu0 0
        %1191 = vmatpush1.bf16.xpose.msra.mxu0 0
        %1192 = vmatprep.subr.bf16.mxu0 0
        %1193 = vmatpush1.bf16.xpose.msra.mxu0 0
        %1194 = vmatprep.subr.bf16.mxu0 0
        %1195 = vmatpush1.bf16.xpose.msra.mxu0 0
        %1196 = vmatprep.subr.bf16.mxu0 0
        %1197 = vmatpush1.bf16.xpose.msra.mxu0 0
        %1198 = vmatprep.subr.bf16.mxu0 0
        %1199 = vmatpush1.bf16.xpose.msra.mxu0 0
        %1200 = vmatprep.subr.bf16.mxu0 0
        %1201 = vmatpush1.bf16.xpose.msra.mxu0 0
        %1202 = vmatprep.subr.bf16.mxu0 0
        %1203 = vmatpush1.bf16.xpose.msra.mxu0 0
        %1204 = vmatprep.subr.bf16.mxu0 0
        %1205 = vmatpush1.bf16.xpose.msra.mxu0 0
        %1206 = vmatprep.subr.bf16.mxu0 0
        %1207 = vmatpush1.bf16.xpose.msra.mxu0 0
        %1208 = vmatprep.mubr.bf16.mxu0 0
        %1209 = vmatmul.mubr.bf16.gmra.mrb[0].mxu0 %v1171
        %v1210 = vpop.f32.mrb[0].mxu0
        %v1211 = vadd.f32 0.0, %v1210
        %v1212 = vpop.f32.mrb[0].mxu0
        %v1213 = vpop.f32.mrb[0].mxu0
        %v1214 = vpop.f32.mrb[0].mxu0
        %1215 = vdwg.mxu0
        %v1217 = vsel %vm1169, %v920, 0
        %v1220 = vsel %vm1169, %v1044, 0
        %1222 = vmatprep.subr.bf16.mxu0 0
        %1223 = vmatpush1.bf16.xpose.msra.mxu0 %v1220
        %1224 = vmatprep.subr.bf16.mxu0 0
        %1225 = vmatpush1.bf16.xpose.msra.mxu0 0
        %1226 = vmatprep.subr.bf16.mxu0 0
        %1227 = vmatpush1.bf16.xpose.msra.mxu0 0
        %1228 = vmatprep.subr.bf16.mxu0 0
        %1229 = vmatpush1.bf16.xpose.msra.mxu0 0
        %1230 = vmatprep.subr.bf16.mxu0 0
        %1231 = vmatpush1.bf16.xpose.msra.mxu0 0
        %1232 = vmatprep.subr.bf16.mxu0 0
        %1233 = vmatpush1.bf16.xpose.msra.mxu0 0
        %1234 = vmatprep.subr.bf16.mxu0 0
        %1235 = vmatpush1.bf16.xpose.msra.mxu0 0
        %1236 = vmatprep.subr.bf16.mxu0 0
        %1237 = vmatpush1.bf16.xpose.msra.mxu0 0
        %1238 = vmatprep.subr.bf16.mxu0 0
        %1239 = vmatpush1.bf16.xpose.msra.mxu0 0
        %1240 = vmatprep.subr.bf16.mxu0 0
        %1241 = vmatpush1.bf16.xpose.msra.mxu0 0
        %1242 = vmatprep.subr.bf16.mxu0 0
        %1243 = vmatpush1.bf16.xpose.msra.mxu0 0
        %1244 = vmatprep.subr.bf16.mxu0 0
        %1245 = vmatpush1.bf16.xpose.msra.mxu0 0
        %1246 = vmatprep.subr.bf16.mxu0 0
        %1247 = vmatpush1.bf16.xpose.msra.mxu0 0
        %1248 = vmatprep.subr.bf16.mxu0 0
        %1249 = vmatpush1.bf16.xpose.msra.mxu0 0
        %1250 = vmatprep.subr.bf16.mxu0 0
        %1251 = vmatpush1.bf16.xpose.msra.mxu0 0
        %1252 = vmatprep.subr.bf16.mxu0 0
        %1253 = vmatpush1.bf16.xpose.msra.mxu0 0
        %1254 = vmatprep.mubr.bf16.mxu0 0
        %1255 = vmatmul.mubr.bf16.gmra.mrb[0].mxu0 %v1217
        %v1256 = vpop.f32.mrb[0].mxu0
        %v1257 = vadd.f32 0.0, %v1256
        %v1258 = vpop.f32.mrb[0].mxu0
        %v1259 = vpop.f32.mrb[0].mxu0
        %v1260 = vpop.f32.mrb[0].mxu0
        %1261 = vdwg.mxu0
        %s1262 = sld [smem:[#allocation3 + %s45]]
        %v1263 = vstv %s1262
        %v1264 = vlaneseq
        %v1265 = vshrl.u32 %v1264, 7
        %v1266 = vsub.s32 0, %v1265
        %1268 = vbcast.lane.b32.xlu0 %v1263, 256
        %v1269 = vpop.permute.xlu0 %1268
        %v1270 = vlaneseq
        %v1271 = vshrl.u32 %v1270, 7
        %v1272 = vsub.s32 0, %v1271
        %v1273 = vrot.slane %v1269, %v1272
        %v1274 = vlaneseq
        %v1275 = vshrl.u32 %v1274, 7
        %v1276 = vsub.s32 1, %v1275
        %v1277 = vrot.slane %v1269, %v1276
        %v1278 = vlaneseq
        %v1279 = vand.u32 %v1278, 127
        %vm1280 = vcmp.lt.s32.totalorder %v1279, %v1273
        %vm1281 = vcmp.lt.s32.totalorder %v1279, %v1277
        %v1282 = vsel %vm1280, %v1211, -1000000.0
        %v1283 = vsel %vm1281, %v1257, -1000000.0
        %vm1284 = vcmask 64512
        %v1285 = vsel %vm1284, %v1282, -inf
        %1286 = vmax.xlane.f32.xlu0 %v1285
        %v1287 = vpop.xlane.xlu0 %1286
        %v1288 = vsel %vm1284, %v1283, -inf
        %1289 = vmax.xlane.f32.xlu0 %v1288
        %v1290 = vpop.xlane.xlu0 %1289
        %v1291 = vsub.f32 %v1282, %v1287
        %v1292 = vsub.f32 %v1283, %v1290
        %v1293 = vmul.f32 %v1291, 1.442695
        %v1294 = vpow.pop %v1293
        %v1295 = vmul.f32 %v1292, 1.442695
        %v1296 = vpow.pop %v1295
        %v1297 = vsel %vm1284, %v1294, 0.0
        %1298 = vadd.xlane.f32.xlu0 %v1297
        %v1299 = vpop.xlane.xlu0 %1298
        %v1300 = vsel %vm1284, %v1296, 0.0
        %1301 = vadd.xlane.f32.xlu0 %v1300
        %v1302 = vpop.xlane.xlu0 %1301
        %v1303 = vrcp.pop %v1299
        %v1304 = vrcp.pop %v1302
        %v1305 = vmul.f32 %v1294, %v1303
        %v1306 = vmul.f32 %v1296, %v1304
        %v1307 = vpack.c.bf16 %v1305, %v1305
        %v1308 = vpack.c.bf16 %v1306, %v1306
        %v1310 = vsel %vm1284, %v1307, 0
        %vm1312 = vcmask 1043456
        %v1314 = vsel %vm1312, %v1167, 0
        %1316 = vmatprep.subr.bf16.mxu0 0
        %1317 = vmatpush1.bf16.msra.mxu0 %v1314
        %1318 = vmatprep.subr.bf16.mxu0 0
        %1319 = vmatpush1.bf16.msra.mxu0 0
        %1320 = vmatprep.subr.bf16.mxu0 0
        %1321 = vmatpush1.bf16.msra.mxu0 0
        %1322 = vmatprep.subr.bf16.mxu0 0
        %1323 = vmatpush1.bf16.msra.mxu0 0
        %1324 = vmatprep.subr.bf16.mxu0 0
        %1325 = vmatpush1.bf16.msra.mxu0 0
        %1326 = vmatprep.subr.bf16.mxu0 0
        %1327 = vmatpush1.bf16.msra.mxu0 0
        %1328 = vmatprep.subr.bf16.mxu0 0
        %1329 = vmatpush1.bf16.msra.mxu0 0
        %1330 = vmatprep.subr.bf16.mxu0 0
        %1331 = vmatpush1.bf16.msra.mxu0 0
        %1332 = vmatprep.subr.bf16.mxu0 0
        %1333 = vmatpush1.bf16.msra.mxu0 0
        %1334 = vmatprep.subr.bf16.mxu0 0
        %1335 = vmatpush1.bf16.msra.mxu0 0
        %1336 = vmatprep.subr.bf16.mxu0 0
        %1337 = vmatpush1.bf16.msra.mxu0 0
        %1338 = vmatprep.subr.bf16.mxu0 0
        %1339 = vmatpush1.bf16.msra.mxu0 0
        %1340 = vmatprep.subr.bf16.mxu0 0
        %1341 = vmatpush1.bf16.msra.mxu0 0
        %1342 = vmatprep.subr.bf16.mxu0 0
        %1343 = vmatpush1.bf16.msra.mxu0 0
        %1344 = vmatprep.subr.bf16.mxu0 0
        %1345 = vmatpush1.bf16.msra.mxu0 0
        %1346 = vmatprep.subr.bf16.mxu0 0
        %1347 = vmatpush1.bf16.msra.mxu0 0
        %1348 = vmatprep.mubr.bf16.mxu0 0
        %1349 = vmatmul.mubr.bf16.gmra.mrb[0].mxu0 %v1310
        %v1350 = vpop.f32.mrb[0].mxu0
        %v1351 = vadd.f32 0.0, %v1350
        %v1352 = vpop.f32.mrb[0].mxu0
        %v1353 = vpop.f32.mrb[0].mxu0
        %v1354 = vpop.f32.mrb[0].mxu0
        %1355 = vdwg.mxu0
        %v1357 = vsel %vm1284, %v1308, 0
        %v1360 = vsel %vm1312, %v1168, 0
        %1362 = vmatprep.subr.bf16.mxu0 0
        %1363 = vmatpush1.bf16.msra.mxu0 %v1360
        %1364 = vmatprep.subr.bf16.mxu0 0
        %1365 = vmatpush1.bf16.msra.mxu0 0
        %1366 = vmatprep.subr.bf16.mxu0 0
        %1367 = vmatpush1.bf16.msra.mxu0 0
        %1368 = vmatprep.subr.bf16.mxu0 0
        %1369 = vmatpush1.bf16.msra.mxu0 0
        %1370 = vmatprep.subr.bf16.mxu0 0
        %1371 = vmatpush1.bf16.msra.mxu0 0
        %1372 = vmatprep.subr.bf16.mxu0 0
        %1373 = vmatpush1.bf16.msra.mxu0 0
        %1374 = vmatprep.subr.bf16.mxu0 0
        %1375 = vmatpush1.bf16.msra.mxu0 0
        %1376 = vmatprep.subr.bf16.mxu0 0
        %1377 = vmatpush1.bf16.msra.mxu0 0
        %1378 = vmatprep.subr.bf16.mxu0 0
        %1379 = vmatpush1.bf16.msra.mxu0 0
        %1380 = vmatprep.subr.bf16.mxu0 0
        %1381 = vmatpush1.bf16.msra.mxu0 0
        %1382 = vmatprep.subr.bf16.mxu0 0
        %1383 = vmatpush1.bf16.msra.mxu0 0
        %1384 = vmatprep.subr.bf16.mxu0 0
        %1385 = vmatpush1.bf16.msra.mxu0 0
        %1386 = vmatprep.subr.bf16.mxu0 0
        %1387 = vmatpush1.bf16.msra.mxu0 0
        %1388 = vmatprep.subr.bf16.mxu0 0
        %1389 = vmatpush1.bf16.msra.mxu0 0
        %1390 = vmatprep.subr.bf16.mxu0 0
        %1391 = vmatpush1.bf16.msra.mxu0 0
        %1392 = vmatprep.subr.bf16.mxu0 0
        %1393 = vmatpush1.bf16.msra.mxu0 0
        %1394 = vmatprep.mubr.bf16.mxu0 0
        %1395 = vmatmul.mubr.bf16.gmra.mrb[0].mxu0 %v1357
        %v1396 = vpop.f32.mrb[0].mxu0
        %v1397 = vadd.f32 0.0, %v1396
        %v1398 = vpop.f32.mrb[0].mxu0
        %v1399 = vpop.f32.mrb[0].mxu0
        %v1400 = vpop.f32.mrb[0].mxu0
        %1401 = vdwg.mxu0
        %v1402 = vcombine.high %v1351, 0.0
        %v1404 = vunpack.c.l.s4 1983009808
        %v1405 = vunpack.c.0.s8 %v1404
        %v1406 = vlaneseq
        %v1407 = vshrl.u32 %v1406, 7
        %v1408 = vsub.s32 %v1405, %v1407
        %v1409 = vrot.slane %v1351, %v1408
        %v1411 = vunpack.c.l.s4 1983009808
        %v1412 = vunpack.c.0.s8 %v1411
        %v1413 = vlaneseq
        %v1414 = vshrl.u32 %v1413, 7
        %v1415 = vsub.s32 %v1412, %v1414
        %v1416 = vrot.slane %v1402, %v1415
        %v1417 = vcombine.high %v1397, 0.0
        %v1419 = vunpack.c.l.s4 1983009808
        %v1420 = vunpack.c.0.s8 %v1419
        %v1421 = vlaneseq
        %v1422 = vshrl.u32 %v1421, 7
        %v1423 = vsub.s32 %v1420, %v1422
        %v1424 = vrot.slane %v1397, %v1423
        %v1426 = vunpack.c.l.s4 1983009808
        %v1427 = vunpack.c.0.s8 %v1426
        %v1428 = vlaneseq
        %v1429 = vshrl.u32 %v1428, 7
        %v1430 = vsub.s32 %v1427, %v1429
        %v1431 = vrot.slane %v1417, %v1430
        %v1432 = vcombine.low %v1409, %v1424
        %v1433 = vcombine.high %v1409, %v1424
        %v1435 = vunpack.c.l.s4 1934713408
        %v1436 = vunpack.c.0.s8 %v1435
        %v1437 = vlaneseq
        %v1438 = vshrl.u32 %v1437, 7
        %v1439 = vsub.s32 %v1436, %v1438
        %v1440 = vrot.slane %v1432, %v1439
        %v1442 = vunpack.c.l.s4 1934713408
        %v1443 = vunpack.c.0.s8 %v1442
        %v1444 = vlaneseq
        %v1445 = vshrl.u32 %v1444, 7
        %v1446 = vsub.s32 %v1443, %v1445
        %v1447 = vrot.slane %v1433, %v1446
        %v1448 = vcombine.low %v1416, %v1431
        %v1449 = vcombine.high %v1416, %v1431
        %v1451 = vunpack.c.l.s4 1934713408
        %v1452 = vunpack.c.0.s8 %v1451
        %v1453 = vlaneseq
        %v1454 = vshrl.u32 %v1453, 7
        %v1455 = vsub.s32 %v1452, %v1454
        %v1456 = vrot.slane %v1448, %v1455
        %v1458 = vunpack.c.l.s4 1934713408
        %v1459 = vunpack.c.0.s8 %v1458
        %v1460 = vlaneseq
        %v1461 = vshrl.u32 %v1460, 7
        %v1462 = vsub.s32 %v1459, %v1461
        %v1463 = vrot.slane %v1449, %v1462
        %v1464 = vcombine.high %v1440, 0.0
        %v1465 = vcombine.high %v1447, 0.0
        %v1466 = vcombine.high %v1456, 0.0
        %v1467 = vcombine.high %v1463, 0.0
        %v1468 = vcombine.low %v1440, %v1447
        %v1470 = vunpack.c.l.s4 1983009808
        %v1471 = vunpack.c.0.s8 %v1470
        %v1472 = vlaneseq
        %v1473 = vshrl.u32 %v1472, 7
        %v1474 = vsub.s32 %v1471, %v1473
        %v1475 = vrot.slane %v1468, %v1474
        %v1476 = vcombine.low %v1464, %v1465
        %v1478 = vunpack.c.l.s4 1983009808
        %v1479 = vunpack.c.0.s8 %v1478
        %v1480 = vlaneseq
        %v1481 = vshrl.u32 %v1480, 7
        %v1482 = vsub.s32 %v1479, %v1481
        %v1483 = vrot.slane %v1476, %v1482
        %v1484 = vcombine.low %v1456, %v1463
        %v1486 = vunpack.c.l.s4 1983009808
        %v1487 = vunpack.c.0.s8 %v1486
        %v1488 = vlaneseq
        %v1489 = vshrl.u32 %v1488, 7
        %v1490 = vsub.s32 %v1487, %v1489
        %v1491 = vrot.slane %v1484, %v1490
        %v1492 = vcombine.low %v1466, %v1467
        %v1494 = vunpack.c.l.s4 1983009808
        %v1495 = vunpack.c.0.s8 %v1494
        %v1496 = vlaneseq
        %v1497 = vshrl.u32 %v1496, 7
        %v1498 = vsub.s32 %v1495, %v1497
        %v1499 = vrot.slane %v1492, %v1498
        %v1500 = vcombine.low %v1475, %v1483
        %v1502 = vunpack.c.l.s4 1934713408
        %v1503 = vunpack.c.0.s8 %v1502
        %v1504 = vlaneseq
        %v1505 = vshrl.u32 %v1504, 7
        %v1506 = vsub.s32 %v1503, %v1505
        %v1507 = vrot.slane %v1500, %v1506
        %v1508 = vcombine.low %v1491, %v1499
        %v1510 = vunpack.c.l.s4 1934713408
        %v1511 = vunpack.c.0.s8 %v1510
        %v1512 = vlaneseq
        %v1513 = vshrl.u32 %v1512, 7
        %v1514 = vsub.s32 %v1511, %v1513
        %v1515 = vrot.slane %v1508, %v1514
        %v1516 = vcombine.low %v1507, %v1515
        %v1517 = vcombine.high %v1507, %v1515
        %1519 = vrot.lane.b32.xlu0 %v1517, 16
        %v1520 = vpop.permute.xlu0 %1519
        %v1522 = vsel %vm1169, %v1516, %v1520
        %v1523 = vpack.c.bf16 %v1522, %v1522
        %v1524 = vld [vmem:[%s699] sm:$0xf]
        %v1525 = vld [vmem:[%s699 + $0x4] sm:$0xf]
        %v1526 = vld [vmem:[%s699 + $0x8] sm:$0xf]
        %v1527 = vld [vmem:[%s699 + $0xc] sm:$0xf]
        %v1528 = vld [vmem:[%s702] sm:$0x1]
        %v1530 = vlaneseq
        %v1531 = vshrl.u32 %v1530, 7
        %v1532 = vsub.s32 0, %v1531
        %v1533 = vrot.slane %v1528, %v1532
        %v1539 = vunpack.c.l.b16 %v1524
        %v1540 = vunpack.c.l.b16 %v1525
        %v1541 = vunpack.c.l.b16 %v1526
        %v1542 = vunpack.c.l.b16 %v1527
        %v1543 = vpack.c.b16 %v1540, %v1539
        %v1544 = vpack.c.b16 %v1542, %v1541
        %v1548 = vsel %vm755, %v1523, 0
        %1550 = vmatprep.subr.bf16.mxu0 0
        %1551 = vmatpush1.bf16.msra.mxu0 %v1543
        %1552 = vmatprep.subr.bf16.mxu0 0
        %1553 = vmatpush1.bf16.msra.mxu0 %v1544
        %1554 = vmatprep.subr.bf16.mxu0 0
        %1555 = vmatpush1.bf16.msra.mxu0 0
        %1556 = vmatprep.subr.bf16.mxu0 0
        %1557 = vmatpush1.bf16.msra.mxu0 0
        %1558 = vmatprep.subr.bf16.mxu0 0
        %1559 = vmatpush1.bf16.msra.mxu0 0
        %1560 = vmatprep.subr.bf16.mxu0 0
        %1561 = vmatpush1.bf16.msra.mxu0 0
        %1562 = vmatprep.subr.bf16.mxu0 0
        %1563 = vmatpush1.bf16.msra.mxu0 0
        %1564 = vmatprep.subr.bf16.mxu0 0
        %1565 = vmatpush1.bf16.msra.mxu0 0
        %1566 = vmatprep.subr.bf16.mxu0 0
        %1567 = vmatpush1.bf16.msra.mxu0 0
        %1568 = vmatprep.subr.bf16.mxu0 0
        %1569 = vmatpush1.bf16.msra.mxu0 0
        %1570 = vmatprep.subr.bf16.mxu0 0
        %1571 = vmatpush1.bf16.msra.mxu0 0
        %1572 = vmatprep.subr.bf16.mxu0 0
        %1573 = vmatpush1.bf16.msra.mxu0 0
        %1574 = vmatprep.subr.bf16.mxu0 0
        %1575 = vmatpush1.bf16.msra.mxu0 0
        %1576 = vmatprep.subr.bf16.mxu0 0
        %1577 = vmatpush1.bf16.msra.mxu0 0
        %1578 = vmatprep.subr.bf16.mxu0 0
        %1579 = vmatpush1.bf16.msra.mxu0 0
        %1580 = vmatprep.subr.bf16.mxu0 0
        %1581 = vmatpush1.bf16.msra.mxu0 0
        %1582 = vmatprep.mubr.bf16.mxu0 0
        %1583 = vmatmul.mubr.bf16.gmra.mrb[0].mxu0 %v1548
        %v1584 = vpop.f32.mrb[0].mxu0
        %v1585 = vadd.f32 %v1533, %v1584
        %v1586 = vpop.f32.mrb[0].mxu0
        %v1587 = vpop.f32.mrb[0].mxu0
        %v1588 = vpop.f32.mrb[0].mxu0
        %1589 = vdwg.mxu0
        %v1590 = vadd.f32 %v730, %v1585
        %v1591 = vld [vmem:[%s581] sm:$0x1]
        %v1592 = vld [vmem:[%s589] sm:$0x1]
        %v1593 = vsel %vm755, %v1590, 0.0
        %1594 = vadd.xlane.f32.xlu0 %v1593
        %v1595 = vpop.xlane.xlu0 %1594
        %v1596 = vrcp.pop 32.0
        %v1597 = vmul.f32 %v1595, %v1596
        %v1598 = vsub.f32 %v1590, %v1597
        %v1599 = vmul.f32 %v1598, %v1598
        %v1600 = vsel %vm755, %v1599, 0.0
        %1601 = vadd.xlane.f32.xlu0 %v1600
        %v1602 = vpop.xlane.xlu0 %1601
        %v1603 = vmul.f32 %v1602, %v1596
        %v1604 = vadd.f32 %v1603, 1e-05
        %v1605 = vrsqrt.pop %v1604
        %v1606 = vmul.f32 %v1598, %v1605
        %v1608 = vlaneseq
        %v1609 = vshrl.u32 %v1608, 7
        %v1610 = vsub.s32 0, %v1609
        %v1611 = vrot.slane %v1591, %v1610
        %v1613 = vmul.f32 %v1606, %v1611
        %v1615 = vlaneseq
        %v1616 = vshrl.u32 %v1615, 7
        %v1617 = vsub.s32 0, %v1616
        %v1618 = vrot.slane %v1592, %v1617
        %v1620 = vadd.f32 %v1613, %v1618
        %v1621 = vpack.c.bf16 %v1620, %v1620
        %v1622 = vld [vmem:[%s707] sm:$0xf]
        %v1623 = vld [vmem:[%s707 + $0x4] sm:$0xf]
        %v1624 = vld [vmem:[%s707 + $0x8] sm:$0xf]
        %v1625 = vld [vmem:[%s707 + $0xc] sm:$0xf]
        %v1626 = vld [vmem:[%s597] sm:$0x1]
        %v1628 = vlaneseq
        %v1629 = vshrl.u32 %v1628, 7
        %v1630 = vsub.s32 0, %v1629
        %v1631 = vrot.slane %v1626, %v1630
        %v1637 = vunpack.c.l.b16 %v1622
        %v1638 = vunpack.c.l.b16 %v1623
        %v1639 = vunpack.c.l.b16 %v1624
        %v1640 = vunpack.c.l.b16 %v1625
        %v1641 = vpack.c.b16 %v1638, %v1637
        %v1642 = vpack.c.b16 %v1640, %v1639
        %v1646 = vsel %vm755, %v1621, 0
        %1648 = vmatprep.subr.bf16.mxu0 0
        %1649 = vmatpush1.bf16.msra.mxu0 %v1641
        %1650 = vmatprep.subr.bf16.mxu0 0
        %1651 = vmatpush1.bf16.msra.mxu0 %v1642
        %1652 = vmatprep.subr.bf16.mxu0 0
        %1653 = vmatpush1.bf16.msra.mxu0 0
        %1654 = vmatprep.subr.bf16.mxu0 0
        %1655 = vmatpush1.bf16.msra.mxu0 0
        %1656 = vmatprep.subr.bf16.mxu0 0
        %1657 = vmatpush1.bf16.msra.mxu0 0
        %1658 = vmatprep.subr.bf16.mxu0 0
        %1659 = vmatpush1.bf16.msra.mxu0 0
        %1660 = vmatprep.subr.bf16.mxu0 0
        %1661 = vmatpush1.bf16.msra.mxu0 0
        %1662 = vmatprep.subr.bf16.mxu0 0
        %1663 = vmatpush1.bf16.msra.mxu0 0
        %1664 = vmatprep.subr.bf16.mxu0 0
        %1665 = vmatpush1.bf16.msra.mxu0 0
        %1666 = vmatprep.subr.bf16.mxu0 0
        %1667 = vmatpush1.bf16.msra.mxu0 0
        %1668 = vmatprep.subr.bf16.mxu0 0
        %1669 = vmatpush1.bf16.msra.mxu0 0
        %1670 = vmatprep.subr.bf16.mxu0 0
        %1671 = vmatpush1.bf16.msra.mxu0 0
        %1672 = vmatprep.subr.bf16.mxu0 0
        %1673 = vmatpush1.bf16.msra.mxu0 0
        %1674 = vmatprep.subr.bf16.mxu0 0
        %1675 = vmatpush1.bf16.msra.mxu0 0
        %1676 = vmatprep.subr.bf16.mxu0 0
        %1677 = vmatpush1.bf16.msra.mxu0 0
        %1678 = vmatprep.subr.bf16.mxu0 0
        %1679 = vmatpush1.bf16.msra.mxu0 0
        %1680 = vmatprep.mubr.bf16.mxu0 0
        %1681 = vmatmul.mubr.bf16.gmra.mrb[0].mxu0 %v1646
        %v1682 = vpop.f32.mrb[0].mxu0
        %v1683 = vadd.f32 %v1631, %v1682
        %v1684 = vpop.f32.mrb[0].mxu0
        %v1685 = vpop.f32.mrb[0].mxu0
        %v1686 = vpop.f32.mrb[0].mxu0
        %1687 = vdwg.mxu0
        %v1688 = vmax.f32 %v1683, 0.0
        %v1689 = vpack.c.bf16 %v1688, %v1688
        %v1690 = vld [vmem:[%s712] sm:$0xf]
        %v1691 = vld [vmem:[%s712 + $0x4] sm:$0xf]
        %v1692 = vld [vmem:[%s712 + $0x8] sm:$0xf]
        %v1693 = vld [vmem:[%s712 + $0xc] sm:$0xf]
        %v1694 = vld [vmem:[%s712 + $0x10] sm:$0xf]
        %v1695 = vld [vmem:[%s712 + $0x14] sm:$0xf]
        %v1696 = vld [vmem:[%s712 + $0x18] sm:$0xf]
        %v1697 = vld [vmem:[%s712 + $0x1c] sm:$0xf]
        %v1698 = vld [vmem:[%s715] sm:$0x1]
        %v1700 = vlaneseq
        %v1701 = vshrl.u32 %v1700, 7
        %v1702 = vsub.s32 0, %v1701
        %v1703 = vrot.slane %v1698, %v1702
        %v1713 = vunpack.c.l.b16 %v1690
        %v1714 = vunpack.c.l.b16 %v1691
        %v1715 = vunpack.c.l.b16 %v1692
        %v1716 = vunpack.c.l.b16 %v1693
        %v1717 = vunpack.c.l.b16 %v1694
        %v1718 = vunpack.c.l.b16 %v1695
        %v1719 = vunpack.c.l.b16 %v1696
        %v1720 = vunpack.c.l.b16 %v1697
        %v1721 = vpack.c.b16 %v1714, %v1713
        %v1722 = vpack.c.b16 %v1716, %v1715
        %v1723 = vpack.c.b16 %v1718, %v1717
        %v1724 = vpack.c.b16 %v1720, %v1719
        %vm1729 = vcmask 523264
        %v1731 = vsel %vm1729, %v1689, 0
        %1733 = vmatprep.subr.bf16.mxu0 0
        %1734 = vmatpush1.bf16.msra.mxu0 %v1721
        %1735 = vmatprep.subr.bf16.mxu0 0
        %1736 = vmatpush1.bf16.msra.mxu0 %v1722
        %1737 = vmatprep.subr.bf16.mxu0 0
        %1738 = vmatpush1.bf16.msra.mxu0 %v1723
        %1739 = vmatprep.subr.bf16.mxu0 0
        %1740 = vmatpush1.bf16.msra.mxu0 %v1724
        %1741 = vmatprep.subr.bf16.mxu0 0
        %1742 = vmatpush1.bf16.msra.mxu0 0
        %1743 = vmatprep.subr.bf16.mxu0 0
        %1744 = vmatpush1.bf16.msra.mxu0 0
        %1745 = vmatprep.subr.bf16.mxu0 0
        %1746 = vmatpush1.bf16.msra.mxu0 0
        %1747 = vmatprep.subr.bf16.mxu0 0
        %1748 = vmatpush1.bf16.msra.mxu0 0
        %1749 = vmatprep.subr.bf16.mxu0 0
        %1750 = vmatpush1.bf16.msra.mxu0 0
        %1751 = vmatprep.subr.bf16.mxu0 0
        %1752 = vmatpush1.bf16.msra.mxu0 0
        %1753 = vmatprep.subr.bf16.mxu0 0
        %1754 = vmatpush1.bf16.msra.mxu0 0
        %1755 = vmatprep.subr.bf16.mxu0 0
        %1756 = vmatpush1.bf16.msra.mxu0 0
        %1757 = vmatprep.subr.bf16.mxu0 0
        %1758 = vmatpush1.bf16.msra.mxu0 0
        %1759 = vmatprep.subr.bf16.mxu0 0
        %1760 = vmatpush1.bf16.msra.mxu0 0
        %1761 = vmatprep.subr.bf16.mxu0 0
        %1762 = vmatpush1.bf16.msra.mxu0 0
        %1763 = vmatprep.subr.bf16.mxu0 0
        %1764 = vmatpush1.bf16.msra.mxu0 0
        %1765 = vmatprep.mubr.bf16.mxu0 0
        %1766 = vmatmul.mubr.bf16.gmra.mrb[0].mxu0 %v1731
        %v1767 = vpop.f32.mrb[0].mxu0
        %v1768 = vadd.f32 %v1703, %v1767
        %v1769 = vpop.f32.mrb[0].mxu0
        %v1770 = vpop.f32.mrb[0].mxu0
        %v1771 = vpop.f32.mrb[0].mxu0
        %1772 = vdwg.mxu0
        %v1773 = vadd.f32 %v1620, %v1768
        %v1774 = vld [vmem:[%s718] sm:$0x1]
        %v1775 = vld [vmem:[%s721] sm:$0x1]
        %v1776 = vsel %vm755, %v1773, 0.0
        %1777 = vadd.xlane.f32.xlu0 %v1776
        %v1778 = vpop.xlane.xlu0 %1777
        %v1779 = vmul.f32 %v1778, %v1596
        %v1780 = vsub.f32 %v1773, %v1779
        %v1781 = vmul.f32 %v1780, %v1780
        %v1782 = vsel %vm755, %v1781, 0.0
        %1783 = vadd.xlane.f32.xlu0 %v1782
        %v1784 = vpop.xlane.xlu0 %1783
        %v1785 = vmul.f32 %v1784, %v1596
        %v1786 = vadd.f32 %v1785, 1e-05
        %v1787 = vrsqrt.pop %v1786
        %v1788 = vmul.f32 %v1780, %v1787
        %v1790 = vlaneseq
        %v1791 = vshrl.u32 %v1790, 7
        %v1792 = vsub.s32 0, %v1791
        %v1793 = vrot.slane %v1774, %v1792
        %v1795 = vmul.f32 %v1788, %v1793
        %v1797 = vlaneseq
        %v1798 = vshrl.u32 %v1797, 7
        %v1799 = vsub.s32 0, %v1798
        %v1800 = vrot.slane %v1775, %v1799
        %v1802 = vadd.f32 %v1795, %v1800
        %1803 = vst.msk [vmem:[%s686] sm:$0xff] %vm755, %v1802
        %s1804 = sand.u32 %s399, 1
        %s1805 = scalar_lea.sflag [#allocation6], %s1804
        %s1806 = sand.u32 %s399, 1
        %s1807 = smul.addr %s1806, 8
        %s1808 = scalar_lea.vmem [#allocation12], %s1807
        // Predicated region
        $region93: #{tpu_custom_call.1} parent=71 // pred_check
          %p1809 = pneg %p409
        $region94: #{tpu_custom_call.1} parent=71 // pred_check_branch
          %1811 = sbr.rel (%p1809) target = $region96
        $region95: #{tpu_custom_call.1} parent=71 // pred_region
          %s1813 = ssub.s32 128, 128
          %1814 = vsyncadd %s1805, %s1813
          %s1815 = smul.addr %s45, 128
          %s1816 = scalar_lea.hbm %s14, %s1815
          %s1818 = sshll.u32 %s1808, 4
          %s1819 = int_to_ptr.vmem [resolvable:$true] %s1818
          %1821 = dma.vmem_to_hbm [thread:$0]  %s1819, 128, %s1816, %s1805
        $region96: #{tpu_custom_call.1} parent=71 // pred_fallthru
          _
      $region72: #{tpu_custom_call.1} parent=5 // pred_fallthru
        _
      %p1822 = scmp.le.s32.totalorder 2, %s36
      // Predicated region
      $region97: #{tpu_custom_call.1} parent=5 // pred_check
        %p1823 = pneg %p1822
      $region98: #{tpu_custom_call.1} parent=5 // pred_check_branch
        %1825 = sbr.rel (%p1823) target = $region100
      $region99: #{tpu_custom_call.1} parent=5 // pred_region
        %s1826 = ssub.s32 %s36, 2
        // Predicated region
        $region101: #{tpu_custom_call.1} parent=99 // pred_check
          %p1827 = pneg %p415
        $region102: #{tpu_custom_call.1} parent=99 // pred_check_branch
          %1829 = sbr.rel (%p1827) target = $region104
        $region103: #{tpu_custom_call.1} parent=99 // pred_region
          %s1830 = sand.u32 %s400, 1
          %s1831 = scalar_lea.sflag [#allocation6], %s1830
          %s1832 = sand.u32 %s400, 1
          %s1833 = smul.addr %s1832, 8
          %s1834 = scalar_lea.vmem [#allocation12], %s1833
          %1835 = dma.done %s1831, 128
        $region104: #{tpu_custom_call.1} parent=99 // pred_fallthru
          _
      $region100: #{tpu_custom_call.1} parent=5 // pred_fallthru
        _
    $region6: #{tpu_custom_call.1} parent=1 // loop_footer
      %s40 = sadd.s32 1, %s36
    $region7: #{tpu_custom_call.1} parent=1 // loop_footer_branch
      %35 = sbr.rel target = $region3
    $region8: #{tpu_custom_call.1} parent=1 // loop_exit
      _
    %1836 = vsyncpa [#allocation5], 1
    %s1837 = scalar_lea.sflag [#allocation5], 1
    %1838 = vsyncpa %s1837, 1
    %1839 = vsyncpa [#allocation8], 1
    %s1840 = scalar_lea.sflag [#allocation8], 1
    %1841 = vsyncpa %s1840, 1
    %1842 = vsyncpa [#allocation11], 1
    %s1843 = scalar_lea.sflag [#allocation11], 1
    %1844 = vsyncpa %s1843, 1
    %1845 = vsyncpa [#allocation6], 1
    %s1846 = scalar_lea.sflag [#allocation6], 1
    %1847 = vsyncpa %s1846, 1

</llo_original>
